<compile_context>
chip_gen: v6e
topology: v6e:2x2x1
jax: 0.10.0
libtpu: 0.0.40
codegen_flags: <defaults>
</compile_context>

<pallas_src>
import functools

import jax
import jax.numpy as jnp
from jax.experimental import pallas as pl
from jax.experimental.pallas import tpu as pltpu


def _supcon_tile_kernel(q_ref, k_ref, tcol_ref, trow_ref,      # inputs
                        loss_ref, card_ref,                    # per-row outputs
                        denom_acc, logp_acc, card_acc,         # VMEM scratch
                        *, temperature, mm_dtype):
    qi = pl.program_id(0)
    kj = pl.program_id(1)
    last_kj = pl.num_programs(1) - 1
    tq = q_ref.shape[0]
    tk = k_ref.shape[0]

    @pl.when(kj == 0)
    def _init():
        denom_acc[...] = jnp.zeros_like(denom_acc)
        logp_acc[...] = jnp.zeros_like(logp_acc)
        card_acc[...] = jnp.zeros_like(card_acc)

    # F.normalize(p=2, dim=1): x * rsqrt(max(sum(x^2), eps^2)) — EUP rsqrt + VPU mul.
    xq = q_ref[...].astype(jnp.float32)
    xk = k_ref[...].astype(jnp.float32)
    pq = xq * jax.lax.rsqrt(jnp.maximum(jnp.sum(xq * xq, axis=1, keepdims=True), 1e-24))
    pk = xk * jax.lax.rsqrt(jnp.maximum(jnp.sum(xk * xk, axis=1, keepdims=True), 1e-24))

    # Similarity tile on the MXU: contract dim 1 of both operands (transposed-RHS
    # form, no explicit transpose). bf16 inputs run the matmul in bf16.
    inv_t = jnp.float32(1.0 / temperature)
    dot = jax.lax.dot_general(
        pq.astype(mm_dtype), pk.astype(mm_dtype),
        (((1,), (1,)), ((), ())),
        preferred_element_type=jnp.float32) * inv_t

    # Row max of a cosine-similarity matrix is its diagonal == 1/temperature
    # (temperature > 0), so the row-max reduce collapses to a constant.
    exp_dot = jnp.exp(dot - inv_t) + 1e-5                       # (tq, tk)

    # Boolean masks only — no f32 (B, B) mask temporaries.
    same = tcol_ref[...] == trow_ref[...]                       # (tq, tk)
    row_idx = qi * tq + jax.lax.broadcasted_iota(jnp.int32, (tq, tk), 0)
    col_idx = kj * tk + jax.lax.broadcasted_iota(jnp.int32, (tq, tk), 1)
    offdiag = row_idx != col_idx
    positive = jnp.logical_and(same, offdiag)

    denom_acc[...] += jnp.sum(jnp.where(offdiag, exp_dot, 0.0), axis=1, keepdims=True)
    logp_acc[...] += jnp.sum(jnp.where(positive, jnp.log(exp_dot), 0.0),
                             axis=1, keepdims=True)
    card_acc[...] += jnp.sum(positive.astype(jnp.float32), axis=1, keepdims=True)

    @pl.when(kj == last_kj)
    def _finalize():
        card = card_acc[...]
        # sum_{j in P(i)} -log(exp_dot_ij / denom_i)
        #   = card_i * log(denom_i) - sum_{j in P(i)} log(exp_dot_ij)
        loss_ref[...] = card * jnp.log(denom_acc[...]) - logp_acc[...]
        card_ref[...] = card


def _pick_tile(pref, align, n):
    """Largest legal tile: `pref` if it divides n and is `align`-aligned, else n."""
    if pref <= n and n % pref == 0 and pref % align == 0:
        return pref
    return n


def supervised_contrastive_loss(projections, targets, temperature=1.0,
                                block_q=128, block_k=128):
    """projections: [B, D] float (f32 or bf16), targets: [B] int -> scalar f32 loss.

    block_q / block_k: similarity-tile sizes. 128 is MXU-aligned on all gens
    (required on v5e); sweep 256 on v6e / v7x (2x256^2 MXU).
    """
    assert temperature > 0, "analytic row-max (1/T) assumes temperature > 0"
    B, D = projections.shape

    # Pad projection_dim to a multiple of 128 lanes: zero columns change neither
    # the row norms nor the dot products, but they fill the vreg lanes / MXU.
    if D % 128 != 0:
        pad = 128 - (D % 128)
        projections = jnp.pad(projections, ((0, 0), (0, pad)))
        D += pad

    tq = _pick_tile(block_q, 8, B)
    tk = _pick_tile(block_k, 128, B)

    mm_dtype = jnp.bfloat16 if projections.dtype == jnp.bfloat16 else jnp.float32

    t = targets.astype(jnp.int32)
    t_col = t.reshape(B, 1)
    t_row = t.reshape(1, B)

    loss_all, card = pl.pallas_call(
        functools.partial(_supcon_tile_kernel, temperature=float(temperature),
                          mm_dtype=mm_dtype),
        out_shape=(jax.ShapeDtypeStruct((B, 1), jnp.float32),
                   jax.ShapeDtypeStruct((B, 1), jnp.float32)),
        grid_spec=pltpu.PrefetchScalarGridSpec(
            num_scalar_prefetch=0,
            grid=(B // tq, B // tk),
            in_specs=[
                pl.BlockSpec((tq, D), lambda qi, kj: (qi, 0)),   # anchor rows
                pl.BlockSpec((tk, D), lambda qi, kj: (kj, 0)),   # contrast rows
                pl.BlockSpec((tq, 1), lambda qi, kj: (qi, 0)),   # targets (column)
                pl.BlockSpec((1, tk), lambda qi, kj: (0, kj)),   # targets (row)
            ],
            out_specs=[
                pl.BlockSpec((tq, 1), lambda qi, kj: (qi, 0)),
                pl.BlockSpec((tq, 1), lambda qi, kj: (qi, 0)),
            ],
            scratch_shapes=[pltpu.VMEM((tq, 1), jnp.float32)] * 3,
        ),
        compiler_params=pltpu.CompilerParams(
            dimension_semantics=("parallel", "arbitrary")),
    )(projections, projections, t_col, t_row)

    # Final O(B) filtered mean. PyTorch filters loss_all > 0 and cardinality > 0
    # independently; in any well-posed batch those index sets coincide, so a
    # joint mask is used here. n_valid == 0 returns 0 instead of NaN.
    loss_all = loss_all[:, 0]
    card = card[:, 0]
    valid = jnp.logical_and(card > 0.0, loss_all > 0.0)
    n_valid = jnp.sum(valid.astype(jnp.float32))
    per_sample = jnp.where(valid, loss_all / jnp.maximum(card, 1.0), 0.0)
    return jnp.where(n_valid > 0.0,
                     jnp.sum(per_sample) / jnp.maximum(n_valid, 1.0),
                     jnp.float32(0.0))


def _reference_loss(projections, targets, temperature=1.0):
    # Pure-JAX replica of the PyTorch forward for verification.
    x = projections.astype(jnp.float32)
    norm = jnp.sqrt(jnp.sum(x * x, axis=1, keepdims=True))
    p = x / jnp.maximum(norm, 1e-12)
    dot = jnp.dot(p, p.T, precision=jax.lax.Precision.HIGHEST) / temperature
    exp_dot = jnp.exp(dot - jnp.max(dot, axis=1, keepdims=True)) + 1e-5
    same = (targets[:, None] == targets[None, :]).astype(jnp.float32)
    anchor_out = 1.0 - jnp.eye(x.shape[0], dtype=jnp.float32)
    mask = same * anchor_out
    card = jnp.sum(mask, axis=1)
    denom = jnp.sum(exp_dot * anchor_out, axis=1, keepdims=True)
    log_prob = -jnp.log(exp_dot / denom)
    loss_all = jnp.sum(log_prob * mask, axis=1)
    valid = jnp.logical_and(card > 0, loss_all > 0)
    per = jnp.where(valid, loss_all / jnp.maximum(card, 1.0), 0.0)
    return jnp.sum(per) / jnp.maximum(jnp.sum(valid.astype(jnp.float32)), 1.0)


if __name__ == "__main__":
    key = jax.random.PRNGKey(0)
    k1, _ = jax.random.split(key)

    # Realistic contrastive batch, still tiny in memory: tiled as a (2, 2) grid
    # of 128x128 similarity tiles.
    B, D = 256, 128
    projections = jax.random.normal(k1, (B, D), dtype=jnp.float32)
    targets = jnp.arange(B, dtype=jnp.int32) % 8      # 8 classes, 32 members each

    loss = supervised_contrastive_loss(projections, targets, temperature=0.5)
    loss = jax.block_until_ready(loss)
    ref = jax.block_until_ready(_reference_loss(projections, targets, 0.5))
    assert jnp.allclose(loss, ref, rtol=5e-4, atol=5e-4), (loss, ref)

    # Single-block fallback path (tiny B, unpadded D).
    B2, D2 = 8, 32
    p2 = jax.random.normal(jax.random.PRNGKey(1), (B2, D2), dtype=jnp.float32)
    t2 = jnp.array([0, 1, 2, 0, 1, 2, 0, 1], dtype=jnp.int32)
    loss2 = jax.block_until_ready(supervised_contrastive_loss(p2, t2, 1.0))
    ref2 = jax.block_until_ready(_reference_loss(p2, t2, 1.0))
    assert jnp.allclose(loss2, ref2, rtol=5e-4, atol=5e-4), (loss2, ref2)

    # Exercise the bf16 MXU path (looser check: bf16 vs f32 reference).
    loss3 = jax.block_until_ready(
        supervised_contrastive_loss(p2.astype(jnp.bfloat16), t2, 1.0))
    assert jnp.isfinite(loss3), loss3

    print("KERNEL_OK")
</pallas_src>

<mosaic_0001>
module attributes {stable_mosaic.version = 11 : i64} {
  func.func @_supcon_tile_kernel(%arg0: i32, %arg1: i32, %arg2: memref<128x128xf32, #tpu.memory_space<vmem>>, %arg3: memref<128x128xf32, #tpu.memory_space<vmem>>, %arg4: memref<128x1xi32, #tpu.memory_space<vmem>>, %arg5: memref<1x128xi32, #tpu.memory_space<vmem>>, %arg6: memref<128x1xf32, #tpu.memory_space<vmem>>, %arg7: memref<128x1xf32, #tpu.memory_space<vmem>>, %arg8: memref<128x1xf32, #tpu.memory_space<vmem>>, %arg9: memref<128x1xf32, #tpu.memory_space<vmem>>, %arg10: memref<128x1xf32, #tpu.memory_space<vmem>>) attributes {dimension_semantics = [#tpu.dimension_semantics<parallel>, #tpu.dimension_semantics<arbitrary>], iteration_bounds = array<i64: 2, 2>, scalar_prefetch = 0 : i64, scratch_operands = 3 : i64, tpu.core_type = #tpu.core_type<tc>, window_params = [{transform_indices = @transform_0, window_bounds = array<i64: 128, 128>}, {transform_indices = @transform_1, window_bounds = array<i64: 128, 128>}, {transform_indices = @transform_2, window_bounds = array<i64: 128, 1>}, {transform_indices = @transform_3, window_bounds = array<i64: 1, 128>}, {transform_indices = @transform_4, window_bounds = array<i64: 128, 1>}, {transform_indices = @transform_5, window_bounds = array<i64: 128, 1>}]} {
    %c0_i32 = arith.constant 0 : i32
    %0 = arith.cmpi eq, %arg1, %c0_i32 : i32
    %1 = arith.extui %0 : i1 to i32
    %c0_i32_0 = arith.constant 0 : i32
    %2 = arith.cmpi ne, %1, %c0_i32_0 : i32
    scf.if %2 {
      %cst_34 = arith.constant 0.000000e+00 : f32
      %69 = vector.broadcast %cst_34 : f32 to vector<128x1xf32>
      %c0_35 = arith.constant 0 : index
      %c0_36 = arith.constant 0 : index
      %70 = vector.load %arg8[%c0_35, %c0_36] : memref<128x1xf32, #tpu.memory_space<vmem>>, vector<128x1xf32>
      tpu.vector_store %arg8[%c0_35, %c0_36], %69 {strides = array<i32>} : memref<128x1xf32, #tpu.memory_space<vmem>>, vector<128x1xf32>,
      %cst_37 = arith.constant 0.000000e+00 : f32
      %71 = vector.broadcast %cst_37 : f32 to vector<128x1xf32>
      %c0_38 = arith.constant 0 : index
      %c0_39 = arith.constant 0 : index
      %72 = vector.load %arg9[%c0_38, %c0_39] : memref<128x1xf32, #tpu.memory_space<vmem>>, vector<128x1xf32>
      tpu.vector_store %arg9[%c0_38, %c0_39], %71 {strides = array<i32>} : memref<128x1xf32, #tpu.memory_space<vmem>>, vector<128x1xf32>,
      %cst_40 = arith.constant 0.000000e+00 : f32
      %73 = vector.broadcast %cst_40 : f32 to vector<128x1xf32>
      %c0_41 = arith.constant 0 : index
      %c0_42 = arith.constant 0 : index
      %74 = vector.load %arg10[%c0_41, %c0_42] : memref<128x1xf32, #tpu.memory_space<vmem>>, vector<128x1xf32>
      tpu.vector_store %arg10[%c0_41, %c0_42], %73 {strides = array<i32>} : memref<128x1xf32, #tpu.memory_space<vmem>>, vector<128x1xf32>,
    } else {
    }
    %c0 = arith.constant 0 : index
    %c0_1 = arith.constant 0 : index
    %3 = vector.load %arg2[%c0, %c0_1] : memref<128x128xf32, #tpu.memory_space<vmem>>, vector<128x128xf32>
    %c0_2 = arith.constant 0 : index
    %c0_3 = arith.constant 0 : index
    %4 = vector.load %arg3[%c0_2, %c0_3] : memref<128x128xf32, #tpu.memory_space<vmem>>, vector<128x128xf32>
    %5 = arith.mulf %3, %3 : vector<128x128xf32>
    %cst = arith.constant dense<0.000000e+00> : vector<128xf32>
    %6 = vector.multi_reduction <add>, %5, %cst [1] : vector<128x128xf32> to vector<128xf32>
    %7 = vector.shape_cast %6 : vector<128xf32> to vector<128x1xf32>
    %cst_4 = arith.constant 1.000000e-24 : f32
    %8 = vector.broadcast %cst_4 : f32 to vector<128x1xf32>
    %9 = arith.maximumf %7, %8 : vector<128x1xf32>
    %10 = math.rsqrt %9 : vector<128x1xf32>
    %11 = vector.broadcast %10 : vector<128x1xf32> to vector<128x128xf32>
    %12 = arith.mulf %3, %11 : vector<128x128xf32>
    %13 = arith.mulf %4, %4 : vector<128x128xf32>
    %cst_5 = arith.constant dense<0.000000e+00> : vector<128xf32>
    %14 = vector.multi_reduction <add>, %13, %cst_5 [1] : vector<128x128xf32> to vector<128xf32>
    %15 = vector.shape_cast %14 : vector<128xf32> to vector<128x1xf32>
    %cst_6 = arith.constant 1.000000e-24 : f32
    %16 = vector.broadcast %cst_6 : f32 to vector<128x1xf32>
    %17 = arith.maximumf %15, %16 : vector<128x1xf32>
    %18 = math.rsqrt %17 : vector<128x1xf32>
    %19 = vector.broadcast %18 : vector<128x1xf32> to vector<128x128xf32>
    %20 = arith.mulf %4, %19 : vector<128x128xf32>
    %cst_7 = arith.constant dense<0.000000e+00> : vector<128x128xf32>
    %21 = tpu.matmul %12, %20, %cst_7 {dimension_numbers = #tpu.dot_dimension_numbers<[1], [1], [0], [0], [0, 0, 1, 0], [], []>} : vector<128x128xf32>, vector<128x128xf32>, vector<128x128xf32> -> vector<128x128xf32>
    %cst_8 = arith.constant 2.000000e+00 : f32
    %22 = vector.broadcast %cst_8 : f32 to vector<128x128xf32>
    %23 = arith.mulf %21, %22 : vector<128x128xf32>
    %cst_9 = arith.constant 2.000000e+00 : f32
    %24 = vector.broadcast %cst_9 : f32 to vector<128x128xf32>
    %25 = arith.subf %23, %24 : vector<128x128xf32>
    %26 = math.exp %25 : vector<128x128xf32>
    %cst_10 = arith.constant 9.99999974E-6 : f32
    %27 = vector.broadcast %cst_10 : f32 to vector<128x128xf32>
    %28 = arith.addf %26, %27 : vector<128x128xf32>
    %c0_11 = arith.constant 0 : index
    %c0_12 = arith.constant 0 : index
    %29 = vector.load %arg4[%c0_11, %c0_12] : memref<128x1xi32, #tpu.memory_space<vmem>>, vector<128x1xi32>
    %c0_13 = arith.constant 0 : index
    %c0_14 = arith.constant 0 : index
    %30 = vector.load %arg5[%c0_13, %c0_14] : memref<1x128xi32, #tpu.memory_space<vmem>>, vector<1x128xi32>
    %31 = vector.broadcast %29 : vector<128x1xi32> to vector<128x128xi32>
    %32 = vector.broadcast %30 : vector<1x128xi32> to vector<128x128xi32>
    %33 = arith.cmpi eq, %31, %32 : vector<128x128xi32>
    %c128_i32 = arith.constant 128 : i32
    %34 = arith.muli %arg0, %c128_i32 : i32
    %35 = tpu.iota {dimensions = array<i32: 0>} : vector<128x128xi32>
    %36 = vector.broadcast %34 : i32 to vector<128x128xi32>
    %37 = arith.addi %36, %35 : vector<128x128xi32>
    %c128_i32_15 = arith.constant 128 : i32
    %38 = arith.muli %arg1, %c128_i32_15 : i32
    %39 = tpu.iota {dimensions = array<i32: 1>} : vector<128x128xi32>
    %40 = vector.broadcast %38 : i32 to vector<128x128xi32>
    %41 = arith.addi %40, %39 : vector<128x128xi32>
    %42 = arith.cmpi ne, %37, %41 : vector<128x128xi32>
    %43 = arith.andi %33, %42 : vector<128x128xi1>
    %c0_16 = arith.constant 0 : index
    %c0_17 = arith.constant 0 : index
    %44 = vector.load %arg8[%c0_16, %c0_17] : memref<128x1xf32, #tpu.memory_space<vmem>>, vector<128x1xf32>
    %cst_18 = arith.constant 0.000000e+00 : f32
    %45 = vector.broadcast %cst_18 : f32 to vector<128x128xf32>
    %46 = arith.select %42, %28, %45 : vector<128x128xi1>, vector<128x128xf32>
    %cst_19 = arith.constant dense<0.000000e+00> : vector<128xf32>
    %47 = vector.multi_reduction <add>, %46, %cst_19 [1] : vector<128x128xf32> to vector<128xf32>
    %48 = vector.shape_cast %47 : vector<128xf32> to vector<128x1xf32>
    %49 = arith.addf %44, %48 : vector<128x1xf32>
    %c0_20 = arith.constant 0 : index
    %c0_21 = arith.constant 0 : index
    %50 = vector.load %arg8[%c0_20, %c0_21] : memref<128x1xf32, #tpu.memory_space<vmem>>, vector<128x1xf32>
    tpu.vector_store %arg8[%c0_20, %c0_21], %49 {strides = array<i32>} : memref<128x1xf32, #tpu.memory_space<vmem>>, vector<128x1xf32>,
    %c0_22 = arith.constant 0 : index
    %c0_23 = arith.constant 0 : index
    %51 = vector.load %arg9[%c0_22, %c0_23] : memref<128x1xf32, #tpu.memory_space<vmem>>, vector<128x1xf32>
    %52 = math.log %28 : vector<128x128xf32>
    %cst_24 = arith.constant 0.000000e+00 : f32
    %53 = vector.broadcast %cst_24 : f32 to vector<128x128xf32>
    %54 = arith.select %43, %52, %53 : vector<128x128xi1>, vector<128x128xf32>
    %cst_25 = arith.constant dense<0.000000e+00> : vector<128xf32>
    %55 = vector.multi_reduction <add>, %54, %cst_25 [1] : vector<128x128xf32> to vector<128xf32>
    %56 = vector.shape_cast %55 : vector<128xf32> to vector<128x1xf32>
    %57 = arith.addf %51, %56 : vector<128x1xf32>
    %c0_26 = arith.constant 0 : index
    %c0_27 = arith.constant 0 : index
    %58 = vector.load %arg9[%c0_26, %c0_27] : memref<128x1xf32, #tpu.memory_space<vmem>>, vector<128x1xf32>
    tpu.vector_store %arg9[%c0_26, %c0_27], %57 {strides = array<i32>} : memref<128x1xf32, #tpu.memory_space<vmem>>, vector<128x1xf32>,
    %c0_28 = arith.constant 0 : index
    %c0_29 = arith.constant 0 : index
    %59 = vector.load %arg10[%c0_28, %c0_29] : memref<128x1xf32, #tpu.memory_space<vmem>>, vector<128x1xf32>
    %60 = arith.extui %43 : vector<128x128xi1> to vector<128x128xi32>
    %61 = arith.sitofp %60 : vector<128x128xi32> to vector<128x128xf32>
    %cst_30 = arith.constant dense<0.000000e+00> : vector<128xf32>
    %62 = vector.multi_reduction <add>, %61, %cst_30 [1] : vector<128x128xf32> to vector<128xf32>
    %63 = vector.shape_cast %62 : vector<128xf32> to vector<128x1xf32>
    %64 = arith.addf %59, %63 : vector<128x1xf32>
    %c0_31 = arith.constant 0 : index
    %c0_32 = arith.constant 0 : index
    %65 = vector.load %arg10[%c0_31, %c0_32] : memref<128x1xf32, #tpu.memory_space<vmem>>, vector<128x1xf32>
    tpu.vector_store %arg10[%c0_31, %c0_32], %64 {strides = array<i32>} : memref<128x1xf32, #tpu.memory_space<vmem>>, vector<128x1xf32>,
    %c1_i32 = arith.constant 1 : i32
    %66 = arith.cmpi eq, %arg1, %c1_i32 : i32
    %67 = arith.extui %66 : i1 to i32
    %c0_i32_33 = arith.constant 0 : i32
    %68 = arith.cmpi ne, %67, %c0_i32_33 : i32
    scf.if %68 {
      %c0_34 = arith.constant 0 : index
      %c0_35 = arith.constant 0 : index
      %69 = vector.load %arg10[%c0_34, %c0_35] : memref<128x1xf32, #tpu.memory_space<vmem>>, vector<128x1xf32>
      %c0_36 = arith.constant 0 : index
      %c0_37 = arith.constant 0 : index
      %70 = vector.load %arg8[%c0_36, %c0_37] : memref<128x1xf32, #tpu.memory_space<vmem>>, vector<128x1xf32>
      %71 = math.log %70 : vector<128x1xf32>
      %72 = arith.mulf %69, %71 : vector<128x1xf32>
      %c0_38 = arith.constant 0 : index
      %c0_39 = arith.constant 0 : index
      %73 = vector.load %arg9[%c0_38, %c0_39] : memref<128x1xf32, #tpu.memory_space<vmem>>, vector<128x1xf32>
      %74 = arith.subf %72, %73 : vector<128x1xf32>
      %c0_40 = arith.constant 0 : index
      %c0_41 = arith.constant 0 : index
      %75 = vector.load %arg6[%c0_40, %c0_41] : memref<128x1xf32, #tpu.memory_space<vmem>>, vector<128x1xf32>
      tpu.vector_store %arg6[%c0_40, %c0_41], %74 {strides = array<i32>} : memref<128x1xf32, #tpu.memory_space<vmem>>, vector<128x1xf32>,
      %c0_42 = arith.constant 0 : index
      %c0_43 = arith.constant 0 : index
      %76 = vector.load %arg7[%c0_42, %c0_43] : memref<128x1xf32, #tpu.memory_space<vmem>>, vector<128x1xf32>
      tpu.vector_store %arg7[%c0_42, %c0_43], %69 {strides = array<i32>} : memref<128x1xf32, #tpu.memory_space<vmem>>, vector<128x1xf32>,
    } else {
    }
    return
  }
  func.func @transform_0(%arg0: i32, %arg1: i32) -> (i32, i32) {
    %c0_i32 = arith.constant 0 : i32
    %c0_i32_0 = arith.constant 0 : i32
    return %arg0, %c0_i32 : i32, i32
  }
  func.func @transform_1(%arg0: i32, %arg1: i32) -> (i32, i32) {
    %c0_i32 = arith.constant 0 : i32
    %c0_i32_0 = arith.constant 0 : i32
    return %arg1, %c0_i32 : i32, i32
  }
  func.func @transform_2(%arg0: i32, %arg1: i32) -> (i32, i32) {
    %c0_i32 = arith.constant 0 : i32
    %c0_i32_0 = arith.constant 0 : i32
    return %arg0, %c0_i32 : i32, i32
  }
  func.func @transform_3(%arg0: i32, %arg1: i32) -> (i32, i32) {
    %c0_i32 = arith.constant 0 : i32
    %c0_i32_0 = arith.constant 0 : i32
    return %c0_i32, %arg1 : i32, i32
  }
  func.func @transform_4(%arg0: i32, %arg1: i32) -> (i32, i32) {
    %c0_i32 = arith.constant 0 : i32
    %c0_i32_0 = arith.constant 0 : i32
    return %arg0, %c0_i32 : i32, i32
  }
  func.func @transform_5(%arg0: i32, %arg1: i32) -> (i32, i32) {
    %c0_i32 = arith.constant 0 : i32
    %c0_i32_0 = arith.constant 0 : i32
    return %arg0, %c0_i32 : i32, i32
  }
}

</mosaic_0001>

<llo_original>
// kernel: tpu_custom_call.1
$region0: #{tpu_custom_call.1}
  #allocation0 [shape = 'u32[]', space=smem, size = 0x4, offset = 0x4, fixed_abs, tag = 'smem constant byte address 0x4 - core index']
  #allocation1 [shape = 'u32[144,128]{1,0:T(1,128)}', space=vmem, size = 0x12000, scoped, tag = 'internal scratch']
  #allocation2 [shape = 'f32[128,1]{1,0:T(8,128)}', space=vmem, size = 0x10000, scoped, tag = 'scratch operand']
  #allocation3 [shape = 'f32[128,1]{1,0:T(8,128)}', space=vmem, size = 0x10000, scoped, tag = 'scratch operand']
  #allocation4 [shape = 'f32[128,1]{1,0:T(8,128)}', space=vmem, size = 0x10000, scoped, tag = 'scratch operand']
  %s0 = inlined_call_operand.vmem [shape: f32[256,128], index: 0, kind: input, shape index: {}]
  %s1 = inlined_call_operand.hbm [shape: f32[256,128], index: 1, kind: input, shape index: {}]
  %s2 = inlined_call_operand.vmem [shape: s32[256,1], index: 2, kind: input, shape index: {}]
  %s3 = inlined_call_operand.vmem [shape: s32[1,256], index: 3, kind: input, shape index: {}]
  %s4 = inlined_call_operand.vmem [shape: f32[256,1], index: 4, kind: output, shape index: {0}]
  %s5 = inlined_call_operand.vmem [shape: f32[256,1], index: 5, kind: output, shape index: {1}]
  %6 = xla_tuple %s4, %s5
  %s7 = sld [smem:[#allocation0]]
  $region69: #{tpu_custom_call.1} parent=0
    _
  %s9 = ssub.s32 1, %s7
  %s10 = scalar_select 0, %s9, %s7
  $region1: #{tpu_custom_call.1} parent=0
    #allocation5 [shape = 'u8[131072]{0}', space=vmem, size = 0x20000, scoped, tag = 'input window, operand 1']
    #allocation6 [shape = 's32[2]{0}', space=sflag, size = 0x8, scoped, tag = 'scoped memory for tpu_custom_call.1']
    %11 = vsyncpa [#allocation6], 0
    %s12 = scalar_lea.sflag [#allocation6], 1
    %13 = vsyncpa %s12, 0
    loop: start=0, step=1, limit=6
    $region2: #{tpu_custom_call.1} parent=1 // loop_pre_header
      _
    $region3: #{tpu_custom_call.1} parent=1 // loop_header
      %s15 = sphi 0, %s19
      %p16 = scmp.ge.s32.totalorder %s15, 6
      %s22 = sphi 0, %s34
      %s23 = sphi 0, %s30
      %s24 = sphi 0, %s22
      %s25 = sphi 0, %s23
      %s26 = sphi 0, %s24
      %s27 = sphi 0, %s25
      %s37 = sphi 0, %s39
      %s40 = sphi 0, %s37
      %s41 = sphi 0, %s40
      %s57 = sphi 0, %s41
      %s63 = sphi 0, %s65
      %s66 = sphi 0, %s63
      %s67 = sphi 0, %s66
      %s83 = sphi 0, %s67
      %s89 = sphi 0, %s91
      %s92 = sphi 0, %s89
      %s93 = sphi 0, %s92
      %s109 = sphi 0, %s93
      %s115 = sphi 0, %s117
      %s118 = sphi 0, %s115
      %s119 = sphi 0, %s118
      %s135 = sphi 0, %s119
      %s141 = sphi 0, %s143
      %s144 = sphi 0, %s141
      %s145 = sphi 0, %s144
      %s161 = sphi 0, %s145
      %s167 = sphi 0, %s169
      %s170 = sphi 0, %s167
      %s171 = sphi 0, %s170
      %s187 = sphi 0, %s171
    $region4: #{tpu_custom_call.1} parent=1 // loop_header_branch
      %18 = sbr.rel (%p16) target = $region8
    $region5: #{tpu_custom_call.1} parent=1 // loop_body
      %s20 = ssub.s32 %s15, 1
      %s21 = ssub.s32 %s15, 2
      %s28 = sadd.s32 1, %s23
      %p29 = scmp.ge.s32.totalorder %s28, 2
      %s30 = scalar_select %p29, 0, %s28
      %s31 = sadd.s32 1, %s22
      %s32 = scalar_select %p29, %s31, %s22
      %p33 = scmp.ge.s32.totalorder %s32, 2
      %s34 = scalar_select %p33, 0, %s32
      %s35 = ssub.s32 %s22, %s34
      %p36 = scmp.eq.s32.totalorder %s35, 0
      %s38 = sadd.s32 %s37, 1
      %s39 = scalar_select %p36, %s37, %s38
      %p42 = pneg %p36
      %p43 = scmp.eq.s32.totalorder %s15, 3
      %p44 = por %p42, %p43
      %p45 = scmp.ne.s32.totalorder %s37, %s40
      %p46 = scmp.eq.s32.totalorder %s15, 0
      %p47 = por %p45, %p46
      %p48 = scmp.ne.s32.totalorder %s37, %s40
      %p49 = scmp.eq.s32.totalorder %s20, 3
      %p50 = por %p48, %p49
      %p51 = scmp.ne.s32.totalorder %s40, %s41
      %p52 = scmp.eq.s32.totalorder %s20, 0
      %p53 = por %p51, %p52
      %p54 = scmp.ne.s32.totalorder %s40, %s41
      %p55 = scmp.eq.s32.totalorder %s21, 3
      %p56 = por %p54, %p55
      %p58 = scmp.ne.s32.totalorder %s41, %s57
      %p59 = scmp.eq.s32.totalorder %s21, 0
      %p60 = por %p58, %p59
      %s61 = ssub.s32 %s23, %s30
      %p62 = scmp.eq.s32.totalorder %s61, 0
      %s64 = sadd.s32 %s63, 1
      %s65 = scalar_select %p62, %s63, %s64
      %p68 = pneg %p62
      %p69 = scmp.eq.s32.totalorder %s15, 3
      %p70 = por %p68, %p69
      %p71 = scmp.ne.s32.totalorder %s63, %s66
      %p72 = scmp.eq.s32.totalorder %s15, 0
      %p73 = por %p71, %p72
      %p74 = scmp.ne.s32.totalorder %s63, %s66
      %p75 = scmp.eq.s32.totalorder %s20, 3
      %p76 = por %p74, %p75
      %p77 = scmp.ne.s32.totalorder %s66, %s67
      %p78 = scmp.eq.s32.totalorder %s20, 0
      %p79 = por %p77, %p78
      %p80 = scmp.ne.s32.totalorder %s66, %s67
      %p81 = scmp.eq.s32.totalorder %s21, 3
      %p82 = por %p80, %p81
      %p84 = scmp.ne.s32.totalorder %s67, %s83
      %p85 = scmp.eq.s32.totalorder %s21, 0
      %p86 = por %p84, %p85
      %s87 = ssub.s32 %s22, %s34
      %p88 = scmp.eq.s32.totalorder %s87, 0
      %s90 = sadd.s32 %s89, 1
      %s91 = scalar_select %p88, %s89, %s90
      %p94 = pneg %p88
      %p95 = scmp.eq.s32.totalorder %s15, 3
      %p96 = por %p94, %p95
      %p97 = scmp.ne.s32.totalorder %s89, %s92
      %p98 = scmp.eq.s32.totalorder %s15, 0
      %p99 = por %p97, %p98
      %p100 = scmp.ne.s32.totalorder %s89, %s92
      %p101 = scmp.eq.s32.totalorder %s20, 3
      %p102 = por %p100, %p101
      %p103 = scmp.ne.s32.totalorder %s92, %s93
      %p104 = scmp.eq.s32.totalorder %s20, 0
      %p105 = por %p103, %p104
      %p106 = scmp.ne.s32.totalorder %s92, %s93
      %p107 = scmp.eq.s32.totalorder %s21, 3
      %p108 = por %p106, %p107
      %p110 = scmp.ne.s32.totalorder %s93, %s109
      %p111 = scmp.eq.s32.totalorder %s21, 0
      %p112 = por %p110, %p111
      %s113 = ssub.s32 %s23, %s30
      %p114 = scmp.eq.s32.totalorder %s113, 0
      %s116 = sadd.s32 %s115, 1
      %s117 = scalar_select %p114, %s115, %s116
      %p120 = pneg %p114
      %p121 = scmp.eq.s32.totalorder %s15, 3
      %p122 = por %p120, %p121
      %p123 = scmp.ne.s32.totalorder %s115, %s118
      %p124 = scmp.eq.s32.totalorder %s15, 0
      %p125 = por %p123, %p124
      %p126 = scmp.ne.s32.totalorder %s115, %s118
      %p127 = scmp.eq.s32.totalorder %s20, 3
      %p128 = por %p126, %p127
      %p129 = scmp.ne.s32.totalorder %s118, %s119
      %p130 = scmp.eq.s32.totalorder %s20, 0
      %p131 = por %p129, %p130
      %p132 = scmp.ne.s32.totalorder %s118, %s119
      %p133 = scmp.eq.s32.totalorder %s21, 3
      %p134 = por %p132, %p133
      %p136 = scmp.ne.s32.totalorder %s119, %s135
      %p137 = scmp.eq.s32.totalorder %s21, 0
      %p138 = por %p136, %p137
      %s139 = ssub.s32 %s22, %s34
      %p140 = scmp.eq.s32.totalorder %s139, 0
      %s142 = sadd.s32 %s141, 1
      %s143 = scalar_select %p140, %s141, %s142
      %p146 = pneg %p140
      %p147 = scmp.eq.s32.totalorder %s15, 3
      %p148 = por %p146, %p147
      %p149 = scmp.ne.s32.totalorder %s141, %s144
      %p150 = scmp.eq.s32.totalorder %s15, 0
      %p151 = por %p149, %p150
      %p152 = scmp.ne.s32.totalorder %s141, %s144
      %p153 = scmp.eq.s32.totalorder %s20, 3
      %p154 = por %p152, %p153
      %p155 = scmp.ne.s32.totalorder %s144, %s145
      %p156 = scmp.eq.s32.totalorder %s20, 0
      %p157 = por %p155, %p156
      %p158 = scmp.ne.s32.totalorder %s144, %s145
      %p159 = scmp.eq.s32.totalorder %s21, 3
      %p160 = por %p158, %p159
      %p162 = scmp.ne.s32.totalorder %s145, %s161
      %p163 = scmp.eq.s32.totalorder %s21, 0
      %p164 = por %p162, %p163
      %s165 = ssub.s32 %s22, %s34
      %p166 = scmp.eq.s32.totalorder %s165, 0
      %s168 = sadd.s32 %s167, 1
      %s169 = scalar_select %p166, %s167, %s168
      %p172 = pneg %p166
      %p173 = scmp.eq.s32.totalorder %s15, 3
      %p174 = por %p172, %p173
      %p175 = scmp.ne.s32.totalorder %s167, %s170
      %p176 = scmp.eq.s32.totalorder %s15, 0
      %p177 = por %p175, %p176
      %p178 = scmp.ne.s32.totalorder %s167, %s170
      %p179 = scmp.eq.s32.totalorder %s20, 3
      %p180 = por %p178, %p179
      %p181 = scmp.ne.s32.totalorder %s170, %s171
      %p182 = scmp.eq.s32.totalorder %s20, 0
      %p183 = por %p181, %p182
      %p184 = scmp.ne.s32.totalorder %s170, %s171
      %p185 = scmp.eq.s32.totalorder %s21, 3
      %p186 = por %p184, %p185
      %p188 = scmp.ne.s32.totalorder %s171, %s187
      %p189 = scmp.eq.s32.totalorder %s21, 0
      %p190 = por %p188, %p189
      %p191 = scmp.le.s32.totalorder 1, %s15
      %p192 = scmp.lt.s32.totalorder %s15, 5
      %p193 = pnand %p191, %p192
      %p194 = pneg %p193
      // Predicated region
      $region9: #{tpu_custom_call.1} parent=5 // pred_check
        _
      $region10: #{tpu_custom_call.1} parent=5 // pred_check_branch
        %196 = sbr.rel (%p193) target = $region12
      $region11: #{tpu_custom_call.1} parent=5 // pred_region
        %s197 = ssub.s32 %s15, 1
      $region12: #{tpu_custom_call.1} parent=5 // pred_fallthru
        _
      %p198 = scmp.lt.s32.totalorder %s15, 4
      // Predicated region
      $region13: #{tpu_custom_call.1} parent=5 // pred_check
        %p199 = pneg %p198
      $region14: #{tpu_custom_call.1} parent=5 // pred_check_branch
        %201 = sbr.rel (%p199) target = $region16
      $region15: #{tpu_custom_call.1} parent=5 // pred_region
        // Predicated region
        $region17: #{tpu_custom_call.1} parent=15 // pred_check
          %p202 = pneg %p47
        $region18: #{tpu_custom_call.1} parent=15 // pred_check_branch
          %204 = sbr.rel (%p202) target = $region20
        $region19: #{tpu_custom_call.1} parent=15 // pred_region
          %s205 = smul.u32 16, %s22
          %p206 = scmp.lt.s32.totalorder %s205, 31
          %s207 = scalar_select %p206, %s205, 31
          %s208 = smul.addr %s207, 8
          %s209 = scalar_lea.vmem %s0, %s208
          %s210 = smul.u32 16, %s22
        $region20: #{tpu_custom_call.1} parent=15 // pred_fallthru
          _
        // Predicated region
        $region21: #{tpu_custom_call.1} parent=15 // pred_check
          %p211 = pneg %p73
        $region22: #{tpu_custom_call.1} parent=15 // pred_check_branch
          %213 = sbr.rel (%p211) target = $region24
        $region23: #{tpu_custom_call.1} parent=15 // pred_region
          %s214 = sand.u32 %s63, 1
          %s215 = scalar_lea.sflag [#allocation6], %s214
          %s216 = sand.u32 %s63, 1
          %s217 = smul.addr %s216, 128
          %s218 = scalar_lea.vmem [#allocation5], %s217
          %s219 = smul.u32 16, %s23
          %s221 = ssub.s32 2048, 2048
          %222 = vsyncadd %s215, %s221
          %s223 = smul.addr %s219, 128
          %s224 = scalar_lea.hbm %s1, %s223
          %s225 = sshll.u32 %s218, 4
          %s226 = int_to_ptr.vmem [resolvable:$true] %s225
          %231 = dma.hbm_to_vmem [thread:$0]  %s224, 2048, %s226, %s215, 128, 128, 8
        $region24: #{tpu_custom_call.1} parent=15 // pred_fallthru
          _
        // Predicated region
        $region25: #{tpu_custom_call.1} parent=15 // pred_check
          %p232 = pneg %p99
        $region26: #{tpu_custom_call.1} parent=15 // pred_check_branch
          %234 = sbr.rel (%p232) target = $region28
        $region27: #{tpu_custom_call.1} parent=15 // pred_region
          %s235 = smul.u32 16, %s22
          %p236 = scmp.lt.s32.totalorder %s235, 31
          %s237 = scalar_select %p236, %s235, 31
          %s238 = smul.addr %s237, 8
          %s239 = scalar_lea.vmem %s2, %s238
          %s240 = smul.u32 16, %s22
        $region28: #{tpu_custom_call.1} parent=15 // pred_fallthru
          _
        // Predicated region
        $region29: #{tpu_custom_call.1} parent=15 // pred_check
          %p241 = pneg %p125
        $region30: #{tpu_custom_call.1} parent=15 // pred_check_branch
          %243 = sbr.rel (%p241) target = $region32
        $region31: #{tpu_custom_call.1} parent=15 // pred_region
          %p244 = scmp.lt.s32.totalorder %s23, 1
          %s245 = scalar_select %p244, %s23, 1
          %s246 = scalar_lea.vmem %s3, %s245
        $region32: #{tpu_custom_call.1} parent=15 // pred_fallthru
          _
      $region16: #{tpu_custom_call.1} parent=5 // pred_fallthru
        _
      %p247 = scmp.le.s32.totalorder 1, %s15
      %p248 = scmp.lt.s32.totalorder %s15, 5
      %p249 = pnand %p247, %p248
      %p250 = pneg %p249
      // Predicated region
      $region33: #{tpu_custom_call.1} parent=5 // pred_check
        _
      $region34: #{tpu_custom_call.1} parent=5 // pred_check_branch
        %252 = sbr.rel (%p249) target = $region36
      $region35: #{tpu_custom_call.1} parent=5 // pred_region
        %s253 = ssub.s32 %s15, 1
        %s254 = sand.u32 %s66, 1
        %s255 = scalar_lea.sflag [#allocation6], %s254
        %s256 = sand.u32 %s66, 1
        %s257 = smul.addr %s256, 128
        %s258 = scalar_lea.vmem [#allocation5], %s257
        // Predicated region
        $region37: #{tpu_custom_call.1} parent=35 // pred_check
          %p259 = pneg %p79
        $region38: #{tpu_custom_call.1} parent=35 // pred_check_branch
          %261 = sbr.rel (%p259) target = $region40
        $region39: #{tpu_custom_call.1} parent=35 // pred_region
          %262 = dma.done %s255, 2048
        $region40: #{tpu_custom_call.1} parent=35 // pred_fallthru
          _
        %s263 = smul.u32 16, %s24
        %p264 = scmp.lt.s32.totalorder %s263, 31
        %s265 = scalar_select %p264, %s263, 31
        %s266 = smul.addr %s265, 8
        %s267 = scalar_lea.vmem %s0, %s266
        %p268 = pneg %p53
        %p269 = pneg %p50
        %s270 = sand.u32 %s66, 1
        %s271 = scalar_lea.sflag [#allocation6], %s270
        %s272 = sand.u32 %s66, 1
        %s273 = smul.addr %s272, 128
        %s274 = scalar_lea.vmem [#allocation5], %s273
        %p275 = pneg %p79
        %p276 = pneg %p76
        %s277 = smul.u32 16, %s24
        %p278 = scmp.lt.s32.totalorder %s277, 31
        %s279 = scalar_select %p278, %s277, 31
        %s280 = smul.addr %s279, 8
        %s281 = scalar_lea.vmem %s2, %s280
        %p282 = pneg %p105
        %p283 = pneg %p102
        %p284 = scmp.lt.s32.totalorder %s25, 1
        %s285 = scalar_select %p284, %s25, 1
        %s286 = scalar_lea.vmem %s3, %s285
        %p287 = pneg %p131
        %p288 = pneg %p128
        %p289 = pneg %p157
        %p290 = pneg %p154
        %s291 = smul.u32 16, %s24
        %p292 = scmp.lt.s32.totalorder %s291, 31
        %s293 = scalar_select %p292, %s291, 31
        %s294 = smul.addr %s293, 8
        %s295 = scalar_lea.vmem %s4, %s294
        %p296 = pneg %p183
        %p297 = pneg %p180
        %s298 = smul.u32 16, %s24
        %p299 = scmp.lt.s32.totalorder %s298, 31
        %s300 = scalar_select %p299, %s298, 31
        %s301 = smul.addr %s300, 8
        %s302 = scalar_lea.vmem %s5, %s301
        %s303 = smul.u32 16, %s24
        %p304 = scmp.lt.s32.totalorder %s303, 31
        %s305 = scalar_select %p304, %s303, 31
        %s306 = smul.addr %s305, 8
        %s307 = scalar_lea.vmem %s0, %s306
        %s308 = smul.u32 16, %s24
        %s309 = smul.u32 16, %s25
        %s310 = smul.u32 16, %s24
        %p311 = scmp.lt.s32.totalorder %s310, 31
        %s312 = scalar_select %p311, %s310, 31
        %s313 = smul.addr %s312, 8
        %s314 = scalar_lea.vmem %s2, %s313
        %s315 = smul.u32 16, %s24
        %p316 = scmp.lt.s32.totalorder %s25, 1
        %s317 = scalar_select %p316, %s25, 1
        %s318 = scalar_lea.vmem %s3, %s317
        %s319 = smul.u32 16, %s24
        %p320 = scmp.lt.s32.totalorder %s319, 31
        %s321 = scalar_select %p320, %s319, 31
        %s322 = smul.addr %s321, 8
        %s323 = scalar_lea.vmem %s4, %s322
        %s324 = smul.u32 16, %s24
        %s325 = smul.u32 16, %s24
        %p326 = scmp.lt.s32.totalorder %s325, 31
        %s327 = scalar_select %p326, %s325, 31
        %s328 = smul.addr %s327, 8
        %s329 = scalar_lea.vmem %s5, %s328
        %s330 = smul.u32 16, %s24
        %p331 = scmp.eq.s32.totalorder %s25, 0
        // Predicated region
        $region41: #{tpu_custom_call.1} parent=35 // pred_check
          %p332 = pneg %p331
        $region42: #{tpu_custom_call.1} parent=35 // pred_check_branch
          %334 = sbr.rel (%p332) target = $region44
        $region43: #{tpu_custom_call.1} parent=35 // pred_region
          %vm335 = vcmask 7168
          %336 = vst.msk [vmem:[#allocation2] sm:$0xff] %vm335, 0.0
          %337 = vst.msk [vmem:[#allocation2 + $0x8] sm:$0xff] %vm335, 0.0
          %338 = vst.msk [vmem:[#allocation2 + $0x10] sm:$0xff] %vm335, 0.0
          %339 = vst.msk [vmem:[#allocation2 + $0x18] sm:$0xff] %vm335, 0.0
          %340 = vst.msk [vmem:[#allocation2 + $0x20] sm:$0xff] %vm335, 0.0
          %341 = vst.msk [vmem:[#allocation2 + $0x28] sm:$0xff] %vm335, 0.0
          %342 = vst.msk [vmem:[#allocation2 + $0x30] sm:$0xff] %vm335, 0.0
          %343 = vst.msk [vmem:[#allocation2 + $0x38] sm:$0xff] %vm335, 0.0
          %344 = vst.msk [vmem:[#allocation2 + $0x40] sm:$0xff] %vm335, 0.0
          %345 = vst.msk [vmem:[#allocation2 + $0x48] sm:$0xff] %vm335, 0.0
          %346 = vst.msk [vmem:[#allocation2 + $0x50] sm:$0xff] %vm335, 0.0
          %347 = vst.msk [vmem:[#allocation2 + $0x58] sm:$0xff] %vm335, 0.0
          %348 = vst.msk [vmem:[#allocation2 + $0x60] sm:$0xff] %vm335, 0.0
          %349 = vst.msk [vmem:[#allocation2 + $0x68] sm:$0xff] %vm335, 0.0
          %350 = vst.msk [vmem:[#allocation2 + $0x70] sm:$0xff] %vm335, 0.0
          %351 = vst.msk [vmem:[#allocation2 + $0x78] sm:$0xff] %vm335, 0.0
          %352 = vst.msk [vmem:[#allocation3] sm:$0xff] %vm335, 0.0
          %353 = vst.msk [vmem:[#allocation3 + $0x8] sm:$0xff] %vm335, 0.0
          %354 = vst.msk [vmem:[#allocation3 + $0x10] sm:$0xff] %vm335, 0.0
          %355 = vst.msk [vmem:[#allocation3 + $0x18] sm:$0xff] %vm335, 0.0
          %356 = vst.msk [vmem:[#allocation3 + $0x20] sm:$0xff] %vm335, 0.0
          %357 = vst.msk [vmem:[#allocation3 + $0x28] sm:$0xff] %vm335, 0.0
          %358 = vst.msk [vmem:[#allocation3 + $0x30] sm:$0xff] %vm335, 0.0
          %359 = vst.msk [vmem:[#allocation3 + $0x38] sm:$0xff] %vm335, 0.0
          %360 = vst.msk [vmem:[#allocation3 + $0x40] sm:$0xff] %vm335, 0.0
          %361 = vst.msk [vmem:[#allocation3 + $0x48] sm:$0xff] %vm335, 0.0
          %362 = vst.msk [vmem:[#allocation3 + $0x50] sm:$0xff] %vm335, 0.0
          %363 = vst.msk [vmem:[#allocation3 + $0x58] sm:$0xff] %vm335, 0.0
          %364 = vst.msk [vmem:[#allocation3 + $0x60] sm:$0xff] %vm335, 0.0
          %365 = vst.msk [vmem:[#allocation3 + $0x68] sm:$0xff] %vm335, 0.0
          %366 = vst.msk [vmem:[#allocation3 + $0x70] sm:$0xff] %vm335, 0.0
          %367 = vst.msk [vmem:[#allocation3 + $0x78] sm:$0xff] %vm335, 0.0
          %368 = vst.msk [vmem:[#allocation4] sm:$0xff] %vm335, 0.0
          %369 = vst.msk [vmem:[#allocation4 + $0x8] sm:$0xff] %vm335, 0.0
          %370 = vst.msk [vmem:[#allocation4 + $0x10] sm:$0xff] %vm335, 0.0
          %371 = vst.msk [vmem:[#allocation4 + $0x18] sm:$0xff] %vm335, 0.0
          %372 = vst.msk [vmem:[#allocation4 + $0x20] sm:$0xff] %vm335, 0.0
          %373 = vst.msk [vmem:[#allocation4 + $0x28] sm:$0xff] %vm335, 0.0
          %374 = vst.msk [vmem:[#allocation4 + $0x30] sm:$0xff] %vm335, 0.0
          %375 = vst.msk [vmem:[#allocation4 + $0x38] sm:$0xff] %vm335, 0.0
          %376 = vst.msk [vmem:[#allocation4 + $0x40] sm:$0xff] %vm335, 0.0
          %377 = vst.msk [vmem:[#allocation4 + $0x48] sm:$0xff] %vm335, 0.0
          %378 = vst.msk [vmem:[#allocation4 + $0x50] sm:$0xff] %vm335, 0.0
          %379 = vst.msk [vmem:[#allocation4 + $0x58] sm:$0xff] %vm335, 0.0
          %380 = vst.msk [vmem:[#allocation4 + $0x60] sm:$0xff] %vm335, 0.0
          %381 = vst.msk [vmem:[#allocation4 + $0x68] sm:$0xff] %vm335, 0.0
          %382 = vst.msk [vmem:[#allocation4 + $0x70] sm:$0xff] %vm335, 0.0
          %383 = vst.msk [vmem:[#allocation4 + $0x78] sm:$0xff] %vm335, 0.0
        $region44: #{tpu_custom_call.1} parent=35 // pred_fallthru
          _
        %v384 = vld [vmem:[%s307] sm:$0xff]
        %v385 = vld [vmem:[%s307 + $0x8] sm:$0xff]
        %v386 = vld [vmem:[%s307 + $0x10] sm:$0xff]
        %v387 = vld [vmem:[%s307 + $0x18] sm:$0xff]
        %v388 = vld [vmem:[%s307 + $0x20] sm:$0xff]
        %v389 = vld [vmem:[%s307 + $0x28] sm:$0xff]
        %v390 = vld [vmem:[%s307 + $0x30] sm:$0xff]
        %v391 = vld [vmem:[%s307 + $0x38] sm:$0xff]
        %v392 = vld [vmem:[%s307 + $0x40] sm:$0xff]
        %v393 = vld [vmem:[%s307 + $0x48] sm:$0xff]
        %v394 = vld [vmem:[%s307 + $0x50] sm:$0xff]
        %v395 = vld [vmem:[%s307 + $0x58] sm:$0xff]
        %v396 = vld [vmem:[%s307 + $0x60] sm:$0xff]
        %v397 = vld [vmem:[%s307 + $0x68] sm:$0xff]
        %v398 = vld [vmem:[%s307 + $0x70] sm:$0xff]
        %v399 = vld [vmem:[%s307 + $0x78] sm:$0xff]
        %v400 = vld [vmem:[%s258] sm:$0xff]
        %v401 = vld [vmem:[%s258 + $0x8] sm:$0xff]
        %v402 = vld [vmem:[%s258 + $0x10] sm:$0xff]
        %v403 = vld [vmem:[%s258 + $0x18] sm:$0xff]
        %v404 = vld [vmem:[%s258 + $0x20] sm:$0xff]
        %v405 = vld [vmem:[%s258 + $0x28] sm:$0xff]
        %v406 = vld [vmem:[%s258 + $0x30] sm:$0xff]
        %v407 = vld [vmem:[%s258 + $0x38] sm:$0xff]
        %v408 = vld [vmem:[%s258 + $0x40] sm:$0xff]
        %v409 = vld [vmem:[%s258 + $0x48] sm:$0xff]
        %v410 = vld [vmem:[%s258 + $0x50] sm:$0xff]
        %v411 = vld [vmem:[%s258 + $0x58] sm:$0xff]
        %v412 = vld [vmem:[%s258 + $0x60] sm:$0xff]
        %v413 = vld [vmem:[%s258 + $0x68] sm:$0xff]
        %v414 = vld [vmem:[%s258 + $0x70] sm:$0xff]
        %v415 = vld [vmem:[%s258 + $0x78] sm:$0xff]
        %v416 = vmul.f32 %v384, %v384
        %v417 = vmul.f32 %v385, %v385
        %v418 = vmul.f32 %v386, %v386
        %v419 = vmul.f32 %v387, %v387
        %v420 = vmul.f32 %v388, %v388
        %v421 = vmul.f32 %v389, %v389
        %v422 = vmul.f32 %v390, %v390
        %v423 = vmul.f32 %v391, %v391
        %v424 = vmul.f32 %v392, %v392
        %v425 = vmul.f32 %v393, %v393
        %v426 = vmul.f32 %v394, %v394
        %v427 = vmul.f32 %v395, %v395
        %v428 = vmul.f32 %v396, %v396
        %v429 = vmul.f32 %v397, %v397
        %v430 = vmul.f32 %v398, %v398
        %v431 = vmul.f32 %v399, %v399
        %432 = vadd.xlane.f32.xlu0 %v416
        %v433 = vpop.xlane.xlu0 %432
        %434 = vadd.xlane.f32.xlu0 %v417
        %v435 = vpop.xlane.xlu0 %434
        %436 = vadd.xlane.f32.xlu0 %v418
        %v437 = vpop.xlane.xlu0 %436
        %438 = vadd.xlane.f32.xlu0 %v419
        %v439 = vpop.xlane.xlu0 %438
        %440 = vadd.xlane.f32.xlu0 %v420
        %v441 = vpop.xlane.xlu0 %440
        %442 = vadd.xlane.f32.xlu0 %v421
        %v443 = vpop.xlane.xlu0 %442
        %444 = vadd.xlane.f32.xlu0 %v422
        %v445 = vpop.xlane.xlu0 %444
        %446 = vadd.xlane.f32.xlu0 %v423
        %v447 = vpop.xlane.xlu0 %446
        %448 = vadd.xlane.f32.xlu0 %v424
        %v449 = vpop.xlane.xlu0 %448
        %450 = vadd.xlane.f32.xlu0 %v425
        %v451 = vpop.xlane.xlu0 %450
        %452 = vadd.xlane.f32.xlu0 %v426
        %v453 = vpop.xlane.xlu0 %452
        %454 = vadd.xlane.f32.xlu0 %v427
        %v455 = vpop.xlane.xlu0 %454
        %456 = vadd.xlane.f32.xlu0 %v428
        %v457 = vpop.xlane.xlu0 %456
        %458 = vadd.xlane.f32.xlu0 %v429
        %v459 = vpop.xlane.xlu0 %458
        %460 = vadd.xlane.f32.xlu0 %v430
        %v461 = vpop.xlane.xlu0 %460
        %462 = vadd.xlane.f32.xlu0 %v431
        %v463 = vpop.xlane.xlu0 %462
        %v464 = vmax.f32 %v433, 1e-24
        %v465 = vmax.f32 %v435, 1e-24
        %v466 = vmax.f32 %v437, 1e-24
        %v467 = vmax.f32 %v439, 1e-24
        %v468 = vmax.f32 %v441, 1e-24
        %v469 = vmax.f32 %v443, 1e-24
        %v470 = vmax.f32 %v445, 1e-24
        %v471 = vmax.f32 %v447, 1e-24
        %v472 = vmax.f32 %v449, 1e-24
        %v473 = vmax.f32 %v451, 1e-24
        %v474 = vmax.f32 %v453, 1e-24
        %v475 = vmax.f32 %v455, 1e-24
        %v476 = vmax.f32 %v457, 1e-24
        %v477 = vmax.f32 %v459, 1e-24
        %v478 = vmax.f32 %v461, 1e-24
        %v479 = vmax.f32 %v463, 1e-24
        %v480 = vrsqrt.pop %v464
        %v481 = vrsqrt.pop %v465
        %v482 = vrsqrt.pop %v466
        %v483 = vrsqrt.pop %v467
        %v484 = vrsqrt.pop %v468
        %v485 = vrsqrt.pop %v469
        %v486 = vrsqrt.pop %v470
        %v487 = vrsqrt.pop %v471
        %v488 = vrsqrt.pop %v472
        %v489 = vrsqrt.pop %v473
        %v490 = vrsqrt.pop %v474
        %v491 = vrsqrt.pop %v475
        %v492 = vrsqrt.pop %v476
        %v493 = vrsqrt.pop %v477
        %v494 = vrsqrt.pop %v478
        %v495 = vrsqrt.pop %v479
        %v496 = vmul.f32 %v384, %v480
        %v497 = vmul.f32 %v385, %v481
        %v498 = vmul.f32 %v386, %v482
        %v499 = vmul.f32 %v387, %v483
        %v500 = vmul.f32 %v388, %v484
        %v501 = vmul.f32 %v389, %v485
        %v502 = vmul.f32 %v390, %v486
        %v503 = vmul.f32 %v391, %v487
        %v504 = vmul.f32 %v392, %v488
        %v505 = vmul.f32 %v393, %v489
        %v506 = vmul.f32 %v394, %v490
        %v507 = vmul.f32 %v395, %v491
        %v508 = vmul.f32 %v396, %v492
        %v509 = vmul.f32 %v397, %v493
        %v510 = vmul.f32 %v398, %v494
        %v511 = vmul.f32 %v399, %v495
        %v512 = vmul.f32 %v400, %v400
        %v513 = vmul.f32 %v401, %v401
        %v514 = vmul.f32 %v402, %v402
        %v515 = vmul.f32 %v403, %v403
        %v516 = vmul.f32 %v404, %v404
        %v517 = vmul.f32 %v405, %v405
        %v518 = vmul.f32 %v406, %v406
        %v519 = vmul.f32 %v407, %v407
        %v520 = vmul.f32 %v408, %v408
        %v521 = vmul.f32 %v409, %v409
        %v522 = vmul.f32 %v410, %v410
        %v523 = vmul.f32 %v411, %v411
        %v524 = vmul.f32 %v412, %v412
        %v525 = vmul.f32 %v413, %v413
        %v526 = vmul.f32 %v414, %v414
        %v527 = vmul.f32 %v415, %v415
        %528 = vadd.xlane.f32.xlu0 %v512
        %v529 = vpop.xlane.xlu0 %528
        %530 = vadd.xlane.f32.xlu0 %v513
        %v531 = vpop.xlane.xlu0 %530
        %532 = vadd.xlane.f32.xlu0 %v514
        %v533 = vpop.xlane.xlu0 %532
        %534 = vadd.xlane.f32.xlu0 %v515
        %v535 = vpop.xlane.xlu0 %534
        %536 = vadd.xlane.f32.xlu0 %v516
        %v537 = vpop.xlane.xlu0 %536
        %538 = vadd.xlane.f32.xlu0 %v517
        %v539 = vpop.xlane.xlu0 %538
        %540 = vadd.xlane.f32.xlu0 %v518
        %v541 = vpop.xlane.xlu0 %540
        %542 = vadd.xlane.f32.xlu0 %v519
        %v543 = vpop.xlane.xlu0 %542
        %544 = vadd.xlane.f32.xlu0 %v520
        %v545 = vpop.xlane.xlu0 %544
        %546 = vadd.xlane.f32.xlu0 %v521
        %v547 = vpop.xlane.xlu0 %546
        %548 = vadd.xlane.f32.xlu0 %v522
        %v549 = vpop.xlane.xlu0 %548
        %550 = vadd.xlane.f32.xlu0 %v523
        %v551 = vpop.xlane.xlu0 %550
        %552 = vadd.xlane.f32.xlu0 %v524
        %v553 = vpop.xlane.xlu0 %552
        %554 = vadd.xlane.f32.xlu0 %v525
        %v555 = vpop.xlane.xlu0 %554
        %556 = vadd.xlane.f32.xlu0 %v526
        %v557 = vpop.xlane.xlu0 %556
        %558 = vadd.xlane.f32.xlu0 %v527
        %v559 = vpop.xlane.xlu0 %558
        %v560 = vmax.f32 %v529, 1e-24
        %v561 = vmax.f32 %v531, 1e-24
        %v562 = vmax.f32 %v533, 1e-24
        %v563 = vmax.f32 %v535, 1e-24
        %v564 = vmax.f32 %v537, 1e-24
        %v565 = vmax.f32 %v539, 1e-24
        %v566 = vmax.f32 %v541, 1e-24
        %v567 = vmax.f32 %v543, 1e-24
        %v568 = vmax.f32 %v545, 1e-24
        %v569 = vmax.f32 %v547, 1e-24
        %v570 = vmax.f32 %v549, 1e-24
        %v571 = vmax.f32 %v551, 1e-24
        %v572 = vmax.f32 %v553, 1e-24
        %v573 = vmax.f32 %v555, 1e-24
        %v574 = vmax.f32 %v557, 1e-24
        %v575 = vmax.f32 %v559, 1e-24
        %v576 = vrsqrt.pop %v560
        %v577 = vrsqrt.pop %v561
        %v578 = vrsqrt.pop %v562
        %v579 = vrsqrt.pop %v563
        %v580 = vrsqrt.pop %v564
        %v581 = vrsqrt.pop %v565
        %v582 = vrsqrt.pop %v566
        %v583 = vrsqrt.pop %v567
        %v584 = vrsqrt.pop %v568
        %v585 = vrsqrt.pop %v569
        %v586 = vrsqrt.pop %v570
        %v587 = vrsqrt.pop %v571
        %v588 = vrsqrt.pop %v572
        %v589 = vrsqrt.pop %v573
        %v590 = vrsqrt.pop %v574
        %v591 = vrsqrt.pop %v575
        %v592 = vmul.f32 %v400, %v576
        %v593 = vmul.f32 %v401, %v577
        %v594 = vmul.f32 %v402, %v578
        %v595 = vmul.f32 %v403, %v579
        %v596 = vmul.f32 %v404, %v580
        %v597 = vmul.f32 %v405, %v581
        %v598 = vmul.f32 %v406, %v582
        %v599 = vmul.f32 %v407, %v583
        %v600 = vmul.f32 %v408, %v584
        %v601 = vmul.f32 %v409, %v585
        %v602 = vmul.f32 %v410, %v586
        %v603 = vmul.f32 %v411, %v587
        %v604 = vmul.f32 %v412, %v588
        %v605 = vmul.f32 %v413, %v589
        %v606 = vmul.f32 %v414, %v590
        %v607 = vmul.f32 %v415, %v591
        %608 = vmatprep.subr.mxu0 0.0
        %609 = vmatpush1.xpose.msra.mxu0 %v607
        %610 = vmatprep.subr.mxu0 0.0
        %611 = vmatpush1.xpose.msra.mxu0 %v606
        %612 = vmatprep.subr.mxu0 0.0
        %613 = vmatpush1.xpose.msra.mxu0 %v605
        %614 = vmatprep.subr.mxu0 0.0
        %615 = vmatpush1.xpose.msra.mxu0 %v604
        %616 = vmatprep.subr.mxu0 0.0
        %617 = vmatpush1.xpose.msra.mxu0 %v603
        %618 = vmatprep.subr.mxu0 0.0
        %619 = vmatpush1.xpose.msra.mxu0 %v602
        %620 = vmatprep.subr.mxu0 0.0
        %621 = vmatpush1.xpose.msra.mxu0 %v601
        %622 = vmatprep.subr.mxu0 0.0
        %623 = vmatpush1.xpose.msra.mxu0 %v600
        %624 = vmatprep.subr.mxu0 0.0
        %625 = vmatpush1.xpose.msra.mxu0 %v599
        %626 = vmatprep.subr.mxu0 0.0
        %627 = vmatpush1.xpose.msra.mxu0 %v598
        %628 = vmatprep.subr.mxu0 0.0
        %629 = vmatpush1.xpose.msra.mxu0 %v597
        %630 = vmatprep.subr.mxu0 0.0
        %631 = vmatpush1.xpose.msra.mxu0 %v596
        %632 = vmatprep.subr.mxu0 0.0
        %633 = vmatpush1.xpose.msra.mxu0 %v595
        %634 = vmatprep.subr.mxu0 0.0
        %635 = vmatpush1.xpose.msra.mxu0 %v594
        %636 = vmatprep.subr.mxu0 0.0
        %637 = vmatpush1.xpose.msra.mxu0 %v593
        %638 = vmatprep.subr.mxu0 0.0
        %639 = vmatpush1.xpose.msra.mxu0 %v592
        %640 = vmatprep.subr.mxu0 0.0
        %641 = vmatpush2.xpose.msra.mxu0 0.0
        %642 = vmatprep.subr.mxu0 0.0
        %643 = vmatpush2.xpose.msra.mxu0 0.0
        %644 = vmatprep.subr.mxu0 0.0
        %645 = vmatpush2.xpose.msra.mxu0 0.0
        %646 = vmatprep.subr.mxu0 0.0
        %647 = vmatpush2.xpose.msra.mxu0 0.0
        %648 = vmatprep.subr.mxu0 0.0
        %649 = vmatpush2.xpose.msra.mxu0 0.0
        %650 = vmatprep.subr.mxu0 0.0
        %651 = vmatpush2.xpose.msra.mxu0 0.0
        %652 = vmatprep.subr.mxu0 0.0
        %653 = vmatpush2.xpose.msra.mxu0 0.0
        %654 = vmatprep.subr.mxu0 0.0
        %655 = vmatpush2.xpose.msra.mxu0 0.0
        %656 = vmatprep.subr.mxu0 0.0
        %657 = vmatpush2.xpose.msra.mxu0 0.0
        %658 = vmatprep.subr.mxu0 0.0
        %659 = vmatpush2.xpose.msra.mxu0 0.0
        %660 = vmatprep.subr.mxu0 0.0
        %661 = vmatpush2.xpose.msra.mxu0 0.0
        %662 = vmatprep.subr.mxu0 0.0
        %663 = vmatpush2.xpose.msra.mxu0 0.0
        %664 = vmatprep.subr.mxu0 0.0
        %665 = vmatpush2.xpose.msra.mxu0 0.0
        %666 = vmatprep.subr.mxu0 0.0
        %667 = vmatpush2.xpose.msra.mxu0 0.0
        %668 = vmatprep.subr.mxu0 0.0
        %669 = vmatpush2.xpose.msra.mxu0 0.0
        %670 = vmatprep.subr.mxu0 0.0
        %671 = vmatpush2.xpose.msra.mxu0 0.0
        %672 = vmatprep.mubr.f32.mxu0 0.0
        %673 = vmatmul.mubr.f32.gmra.mxu0 %v496
        %v674 = vpop.f32.mrf.mxu0
        %v675 = vadd.f32 0.0, %v674
        %v676 = vpop.f32.mrf.mxu0
        %677 = vmatprep.mubr.f32.mxu0 0.0
        %678 = vmatmul.mubr.f32.gmra.mxu0 %v497
        %v679 = vpop.f32.mrf.mxu0
        %v680 = vadd.f32 0.0, %v679
        %v681 = vpop.f32.mrf.mxu0
        %682 = vmatprep.mubr.f32.mxu0 0.0
        %683 = vmatmul.mubr.f32.gmra.mxu0 %v498
        %v684 = vpop.f32.mrf.mxu0
        %v685 = vadd.f32 0.0, %v684
        %v686 = vpop.f32.mrf.mxu0
        %687 = vmatprep.mubr.f32.mxu0 0.0
        %688 = vmatmul.mubr.f32.gmra.mxu0 %v499
        %v689 = vpop.f32.mrf.mxu0
        %v690 = vadd.f32 0.0, %v689
        %v691 = vpop.f32.mrf.mxu0
        %692 = vmatprep.mubr.f32.mxu0 0.0
        %693 = vmatmul.mubr.f32.gmra.mxu0 %v500
        %v694 = vpop.f32.mrf.mxu0
        %v695 = vadd.f32 0.0, %v694
        %v696 = vpop.f32.mrf.mxu0
        %697 = vmatprep.mubr.f32.mxu0 0.0
        %698 = vmatmul.mubr.f32.gmra.mxu0 %v501
        %v699 = vpop.f32.mrf.mxu0
        %v700 = vadd.f32 0.0, %v699
        %v701 = vpop.f32.mrf.mxu0
        %702 = vmatprep.mubr.f32.mxu0 0.0
        %703 = vmatmul.mubr.f32.gmra.mxu0 %v502
        %v704 = vpop.f32.mrf.mxu0
        %v705 = vadd.f32 0.0, %v704
        %v706 = vpop.f32.mrf.mxu0
        %707 = vmatprep.mubr.f32.mxu0 0.0
        %708 = vmatmul.mubr.f32.gmra.mxu0 %v503
        %v709 = vpop.f32.mrf.mxu0
        %v710 = vadd.f32 0.0, %v709
        %v711 = vpop.f32.mrf.mxu0
        %712 = vmatprep.mubr.f32.mxu0 0.0
        %713 = vmatmul.mubr.f32.gmra.mxu0 %v504
        %v714 = vpop.f32.mrf.mxu0
        %v715 = vadd.f32 0.0, %v714
        %v716 = vpop.f32.mrf.mxu0
        %717 = vmatprep.mubr.f32.mxu0 0.0
        %718 = vmatmul.mubr.f32.gmra.mxu0 %v505
        %v719 = vpop.f32.mrf.mxu0
        %v720 = vadd.f32 0.0, %v719
        %v721 = vpop.f32.mrf.mxu0
        %722 = vmatprep.mubr.f32.mxu0 0.0
        %723 = vmatmul.mubr.f32.gmra.mxu0 %v506
        %v724 = vpop.f32.mrf.mxu0
        %v725 = vadd.f32 0.0, %v724
        %v726 = vpop.f32.mrf.mxu0
        %727 = vmatprep.mubr.f32.mxu0 0.0
        %728 = vmatmul.mubr.f32.gmra.mxu0 %v507
        %v729 = vpop.f32.mrf.mxu0
        %v730 = vadd.f32 0.0, %v729
        %v731 = vpop.f32.mrf.mxu0
        %732 = vmatprep.mubr.f32.mxu0 0.0
        %733 = vmatmul.mubr.f32.gmra.mxu0 %v508
        %v734 = vpop.f32.mrf.mxu0
        %v735 = vadd.f32 0.0, %v734
        %v736 = vpop.f32.mrf.mxu0
        %737 = vmatprep.mubr.f32.mxu0 0.0
        %738 = vmatmul.mubr.f32.gmra.mxu0 %v509
        %v739 = vpop.f32.mrf.mxu0
        %v740 = vadd.f32 0.0, %v739
        %v741 = vpop.f32.mrf.mxu0
        %742 = vmatprep.mubr.f32.mxu0 0.0
        %743 = vmatmul.mubr.f32.gmra.mxu0 %v510
        %v744 = vpop.f32.mrf.mxu0
        %v745 = vadd.f32 0.0, %v744
        %v746 = vpop.f32.mrf.mxu0
        %747 = vmatprep.mubr.f32.mxu0 0.0
        %748 = vmatmul.mubr.f32.gmra.mxu0 %v511
        %v749 = vpop.f32.mrf.mxu0
        %v750 = vadd.f32 0.0, %v749
        %v751 = vpop.f32.mrf.mxu0
        %752 = vdwg.mxu0
        %v753 = vmul.f32 %v675, 2.0
        %v754 = vmul.f32 %v680, 2.0
        %v755 = vmul.f32 %v685, 2.0
        %v756 = vmul.f32 %v690, 2.0
        %v757 = vmul.f32 %v695, 2.0
        %v758 = vmul.f32 %v700, 2.0
        %v759 = vmul.f32 %v705, 2.0
        %v760 = vmul.f32 %v710, 2.0
        %v761 = vmul.f32 %v715, 2.0
        %v762 = vmul.f32 %v720, 2.0
        %v763 = vmul.f32 %v725, 2.0
        %v764 = vmul.f32 %v730, 2.0
        %v765 = vmul.f32 %v735, 2.0
        %v766 = vmul.f32 %v740, 2.0
        %v767 = vmul.f32 %v745, 2.0
        %v768 = vmul.f32 %v750, 2.0
        %v769 = vsub.f32 %v753, 2.0
        %v770 = vsub.f32 %v754, 2.0
        %v771 = vsub.f32 %v755, 2.0
        %v772 = vsub.f32 %v756, 2.0
        %v773 = vsub.f32 %v757, 2.0
        %v774 = vsub.f32 %v758, 2.0
        %v775 = vsub.f32 %v759, 2.0
        %v776 = vsub.f32 %v760, 2.0
        %v777 = vsub.f32 %v761, 2.0
        %v778 = vsub.f32 %v762, 2.0
        %v779 = vsub.f32 %v763, 2.0
        %v780 = vsub.f32 %v764, 2.0
        %v781 = vsub.f32 %v765, 2.0
        %v782 = vsub.f32 %v766, 2.0
        %v783 = vsub.f32 %v767, 2.0
        %v784 = vsub.f32 %v768, 2.0
        %v785 = vmul.f32 %v769, 1.442695
        %v786 = vpow.pop %v785
        %v787 = vmul.f32 %v770, 1.442695
        %v788 = vpow.pop %v787
        %v789 = vmul.f32 %v771, 1.442695
        %v790 = vpow.pop %v789
        %v791 = vmul.f32 %v772, 1.442695
        %v792 = vpow.pop %v791
        %v793 = vmul.f32 %v773, 1.442695
        %v794 = vpow.pop %v793
        %v795 = vmul.f32 %v774, 1.442695
        %v796 = vpow.pop %v795
        %v797 = vmul.f32 %v775, 1.442695
        %v798 = vpow.pop %v797
        %v799 = vmul.f32 %v776, 1.442695
        %v800 = vpow.pop %v799
        %v801 = vmul.f32 %v777, 1.442695
        %v802 = vpow.pop %v801
        %v803 = vmul.f32 %v778, 1.442695
        %v804 = vpow.pop %v803
        %v805 = vmul.f32 %v779, 1.442695
        %v806 = vpow.pop %v805
        %v807 = vmul.f32 %v780, 1.442695
        %v808 = vpow.pop %v807
        %v809 = vmul.f32 %v781, 1.442695
        %v810 = vpow.pop %v809
        %v811 = vmul.f32 %v782, 1.442695
        %v812 = vpow.pop %v811
        %v813 = vmul.f32 %v783, 1.442695
        %v814 = vpow.pop %v813
        %v815 = vmul.f32 %v784, 1.442695
        %v816 = vpow.pop %v815
        %v817 = vadd.f32 %v786, 1e-05
        %v818 = vadd.f32 %v788, 1e-05
        %v819 = vadd.f32 %v790, 1e-05
        %v820 = vadd.f32 %v792, 1e-05
        %v821 = vadd.f32 %v794, 1e-05
        %v822 = vadd.f32 %v796, 1e-05
        %v823 = vadd.f32 %v798, 1e-05
        %v824 = vadd.f32 %v800, 1e-05
        %v825 = vadd.f32 %v802, 1e-05
        %v826 = vadd.f32 %v804, 1e-05
        %v827 = vadd.f32 %v806, 1e-05
        %v828 = vadd.f32 %v808, 1e-05
        %v829 = vadd.f32 %v810, 1e-05
        %v830 = vadd.f32 %v812, 1e-05
        %v831 = vadd.f32 %v814, 1e-05
        %v832 = vadd.f32 %v816, 1e-05
        %v833 = vld [vmem:[%s314] sm:$0xff]
        %v834 = vld [vmem:[%s314 + $0x8] sm:$0xff]
        %v835 = vld [vmem:[%s314 + $0x10] sm:$0xff]
        %v836 = vld [vmem:[%s314 + $0x18] sm:$0xff]
        %v837 = vld [vmem:[%s314 + $0x20] sm:$0xff]
        %v838 = vld [vmem:[%s314 + $0x28] sm:$0xff]
        %v839 = vld [vmem:[%s314 + $0x30] sm:$0xff]
        %v840 = vld [vmem:[%s314 + $0x38] sm:$0xff]
        %v841 = vld [vmem:[%s314 + $0x40] sm:$0xff]
        %v842 = vld [vmem:[%s314 + $0x48] sm:$0xff]
        %v843 = vld [vmem:[%s314 + $0x50] sm:$0xff]
        %v844 = vld [vmem:[%s314 + $0x58] sm:$0xff]
        %v845 = vld [vmem:[%s314 + $0x60] sm:$0xff]
        %v846 = vld [vmem:[%s314 + $0x68] sm:$0xff]
        %v847 = vld [vmem:[%s314 + $0x70] sm:$0xff]
        %v848 = vld [vmem:[%s314 + $0x78] sm:$0xff]
        %v849 = vld [vmem:[%s318] sm:$0x1]
        %850 = vset.pattern.permute.xlu0 0
        %851 = vperm.xlu0 %850, %v833
        %v852 = vpop.permute.xlu0 %851
        %853 = vset.pattern.permute.xlu0 0
        %854 = vperm.xlu0 %853, %v834
        %v855 = vpop.permute.xlu0 %854
        %856 = vset.pattern.permute.xlu0 0
        %857 = vperm.xlu0 %856, %v835
        %v858 = vpop.permute.xlu0 %857
        %859 = vset.pattern.permute.xlu0 0
        %860 = vperm.xlu0 %859, %v836
        %v861 = vpop.permute.xlu0 %860
        %862 = vset.pattern.permute.xlu0 0
        %863 = vperm.xlu0 %862, %v837
        %v864 = vpop.permute.xlu0 %863
        %865 = vset.pattern.permute.xlu0 0
        %866 = vperm.xlu0 %865, %v838
        %v867 = vpop.permute.xlu0 %866
        %868 = vset.pattern.permute.xlu0 0
        %869 = vperm.xlu0 %868, %v839
        %v870 = vpop.permute.xlu0 %869
        %871 = vset.pattern.permute.xlu0 0
        %872 = vperm.xlu0 %871, %v840
        %v873 = vpop.permute.xlu0 %872
        %874 = vset.pattern.permute.xlu0 0
        %875 = vperm.xlu0 %874, %v841
        %v876 = vpop.permute.xlu0 %875
        %877 = vset.pattern.permute.xlu0 0
        %878 = vperm.xlu0 %877, %v842
        %v879 = vpop.permute.xlu0 %878
        %880 = vset.pattern.permute.xlu0 0
        %881 = vperm.xlu0 %880, %v843
        %v882 = vpop.permute.xlu0 %881
        %883 = vset.pattern.permute.xlu0 0
        %884 = vperm.xlu0 %883, %v844
        %v885 = vpop.permute.xlu0 %884
        %886 = vset.pattern.permute.xlu0 0
        %887 = vperm.xlu0 %886, %v845
        %v888 = vpop.permute.xlu0 %887
        %889 = vset.pattern.permute.xlu0 0
        %890 = vperm.xlu0 %889, %v846
        %v891 = vpop.permute.xlu0 %890
        %892 = vset.pattern.permute.xlu0 0
        %893 = vperm.xlu0 %892, %v847
        %v894 = vpop.permute.xlu0 %893
        %895 = vset.pattern.permute.xlu0 0
        %896 = vperm.xlu0 %895, %v848
        %v897 = vpop.permute.xlu0 %896
        %v898 = vlaneseq
        %v899 = vshrl.u32 %v898, 7
        %v900 = vsub.s32 0, %v899
        %v901 = vrot.slane %v849, %v900
        %vm902 = vcmp.eq.s32.totalorder %v852, %v901
        %vm903 = vcmp.eq.s32.totalorder %v855, %v901
        %vm904 = vcmp.eq.s32.totalorder %v858, %v901
        %vm905 = vcmp.eq.s32.totalorder %v861, %v901
        %vm906 = vcmp.eq.s32.totalorder %v864, %v901
        %vm907 = vcmp.eq.s32.totalorder %v867, %v901
        %vm908 = vcmp.eq.s32.totalorder %v870, %v901
        %vm909 = vcmp.eq.s32.totalorder %v873, %v901
        %vm910 = vcmp.eq.s32.totalorder %v876, %v901
        %vm911 = vcmp.eq.s32.totalorder %v879, %v901
        %vm912 = vcmp.eq.s32.totalorder %v882, %v901
        %vm913 = vcmp.eq.s32.totalorder %v885, %v901
        %vm914 = vcmp.eq.s32.totalorder %v888, %v901
        %vm915 = vcmp.eq.s32.totalorder %v891, %v901
        %vm916 = vcmp.eq.s32.totalorder %v894, %v901
        %vm917 = vcmp.eq.s32.totalorder %v897, %v901
        %s918 = smul.u32 %s24, 128
        %v919 = vlaneseq
        %v920 = vshrl.u32 %v919, 7
        %v921 = vadd.s32 %v920, 8
        %v922 = vadd.s32 %v920, 16
        %v923 = vadd.s32 %v920, 24
        %v924 = vadd.s32 %v920, 32
        %v925 = vadd.s32 %v920, 40
        %v926 = vadd.s32 %v920, 48
        %v927 = vadd.s32 %v920, 56
        %v928 = vadd.s32 %v920, 64
        %v929 = vadd.s32 %v920, 72
        %v930 = vadd.s32 %v920, 80
        %v931 = vadd.s32 %v920, 88
        %v932 = vadd.s32 %v920, 96
        %v933 = vadd.s32 %v920, 104
        %v934 = vadd.s32 %v920, 112
        %v935 = vadd.s32 %v920, 120
        %v936 = vstv %s918
        %v937 = vadd.s32 %v936, %v920
        %v938 = vadd.s32 %v936, %v921
        %v939 = vadd.s32 %v936, %v922
        %v940 = vadd.s32 %v936, %v923
        %v941 = vadd.s32 %v936, %v924
        %v942 = vadd.s32 %v936, %v925
        %v943 = vadd.s32 %v936, %v926
        %v944 = vadd.s32 %v936, %v927
        %v945 = vadd.s32 %v936, %v928
        %v946 = vadd.s32 %v936, %v929
        %v947 = vadd.s32 %v936, %v930
        %v948 = vadd.s32 %v936, %v931
        %v949 = vadd.s32 %v936, %v932
        %v950 = vadd.s32 %v936, %v933
        %v951 = vadd.s32 %v936, %v934
        %v952 = vadd.s32 %v936, %v935
        %s953 = smul.u32 %s25, 128
        %v954 = vlaneseq
        %v955 = vand.u32 %v954, 127
        %v956 = vstv %s953
        %v957 = vadd.s32 %v956, %v955
        %vm958 = vcmp.ne.s32.totalorder %v937, %v957
        %vm959 = vcmp.ne.s32.totalorder %v938, %v957
        %vm960 = vcmp.ne.s32.totalorder %v939, %v957
        %vm961 = vcmp.ne.s32.totalorder %v940, %v957
        %vm962 = vcmp.ne.s32.totalorder %v941, %v957
        %vm963 = vcmp.ne.s32.totalorder %v942, %v957
        %vm964 = vcmp.ne.s32.totalorder %v943, %v957
        %vm965 = vcmp.ne.s32.totalorder %v944, %v957
        %vm966 = vcmp.ne.s32.totalorder %v945, %v957
        %vm967 = vcmp.ne.s32.totalorder %v946, %v957
        %vm968 = vcmp.ne.s32.totalorder %v947, %v957
        %vm969 = vcmp.ne.s32.totalorder %v948, %v957
        %vm970 = vcmp.ne.s32.totalorder %v949, %v957
        %vm971 = vcmp.ne.s32.totalorder %v950, %v957
        %vm972 = vcmp.ne.s32.totalorder %v951, %v957
        %vm973 = vcmp.ne.s32.totalorder %v952, %v957
        %vm974 = vmand %vm902, %vm958
        %vm975 = vmand %vm903, %vm959
        %vm976 = vmand %vm904, %vm960
        %vm977 = vmand %vm905, %vm961
        %vm978 = vmand %vm906, %vm962
        %vm979 = vmand %vm907, %vm963
        %vm980 = vmand %vm908, %vm964
        %vm981 = vmand %vm909, %vm965
        %vm982 = vmand %vm910, %vm966
        %vm983 = vmand %vm911, %vm967
        %vm984 = vmand %vm912, %vm968
        %vm985 = vmand %vm913, %vm969
        %vm986 = vmand %vm914, %vm970
        %vm987 = vmand %vm915, %vm971
        %vm988 = vmand %vm916, %vm972
        %vm989 = vmand %vm917, %vm973
        %v990 = vld [vmem:[#allocation2] sm:$0xff]
        %v991 = vld [vmem:[#allocation2 + $0x8] sm:$0xff]
        %v992 = vld [vmem:[#allocation2 + $0x10] sm:$0xff]
        %v993 = vld [vmem:[#allocation2 + $0x18] sm:$0xff]
        %v994 = vld [vmem:[#allocation2 + $0x20] sm:$0xff]
        %v995 = vld [vmem:[#allocation2 + $0x28] sm:$0xff]
        %v996 = vld [vmem:[#allocation2 + $0x30] sm:$0xff]
        %v997 = vld [vmem:[#allocation2 + $0x38] sm:$0xff]
        %v998 = vld [vmem:[#allocation2 + $0x40] sm:$0xff]
        %v999 = vld [vmem:[#allocation2 + $0x48] sm:$0xff]
        %v1000 = vld [vmem:[#allocation2 + $0x50] sm:$0xff]
        %v1001 = vld [vmem:[#allocation2 + $0x58] sm:$0xff]
        %v1002 = vld [vmem:[#allocation2 + $0x60] sm:$0xff]
        %v1003 = vld [vmem:[#allocation2 + $0x68] sm:$0xff]
        %v1004 = vld [vmem:[#allocation2 + $0x70] sm:$0xff]
        %v1005 = vld [vmem:[#allocation2 + $0x78] sm:$0xff]
        %v1006 = vsel %vm958, %v817, 0.0
        %v1007 = vsel %vm959, %v818, 0.0
        %v1008 = vsel %vm960, %v819, 0.0
        %v1009 = vsel %vm961, %v820, 0.0
        %v1010 = vsel %vm962, %v821, 0.0
        %v1011 = vsel %vm963, %v822, 0.0
        %v1012 = vsel %vm964, %v823, 0.0
        %v1013 = vsel %vm965, %v824, 0.0
        %v1014 = vsel %vm966, %v825, 0.0
        %v1015 = vsel %vm967, %v826, 0.0
        %v1016 = vsel %vm968, %v827, 0.0
        %v1017 = vsel %vm969, %v828, 0.0
        %v1018 = vsel %vm970, %v829, 0.0
        %v1019 = vsel %vm971, %v830, 0.0
        %v1020 = vsel %vm972, %v831, 0.0
        %v1021 = vsel %vm973, %v832, 0.0
        %1022 = vadd.xlane.f32.xlu0 %v1006
        %v1023 = vpop.xlane.xlu0 %1022
        %1024 = vadd.xlane.f32.xlu0 %v1007
        %v1025 = vpop.xlane.xlu0 %1024
        %1026 = vadd.xlane.f32.xlu0 %v1008
        %v1027 = vpop.xlane.xlu0 %1026
        %1028 = vadd.xlane.f32.xlu0 %v1009
        %v1029 = vpop.xlane.xlu0 %1028
        %1030 = vadd.xlane.f32.xlu0 %v1010
        %v1031 = vpop.xlane.xlu0 %1030
        %1032 = vadd.xlane.f32.xlu0 %v1011
        %v1033 = vpop.xlane.xlu0 %1032
        %1034 = vadd.xlane.f32.xlu0 %v1012
        %v1035 = vpop.xlane.xlu0 %1034
        %1036 = vadd.xlane.f32.xlu0 %v1013
        %v1037 = vpop.xlane.xlu0 %1036
        %1038 = vadd.xlane.f32.xlu0 %v1014
        %v1039 = vpop.xlane.xlu0 %1038
        %1040 = vadd.xlane.f32.xlu0 %v1015
        %v1041 = vpop.xlane.xlu0 %1040
        %1042 = vadd.xlane.f32.xlu0 %v1016
        %v1043 = vpop.xlane.xlu0 %1042
        %1044 = vadd.xlane.f32.xlu0 %v1017
        %v1045 = vpop.xlane.xlu0 %1044
        %1046 = vadd.xlane.f32.xlu0 %v1018
        %v1047 = vpop.xlane.xlu0 %1046
        %1048 = vadd.xlane.f32.xlu0 %v1019
        %v1049 = vpop.xlane.xlu0 %1048
        %1050 = vadd.xlane.f32.xlu0 %v1020
        %v1051 = vpop.xlane.xlu0 %1050
        %1052 = vadd.xlane.f32.xlu0 %v1021
        %v1053 = vpop.xlane.xlu0 %1052
        %v1054 = vadd.f32 %v990, %v1023
        %v1055 = vadd.f32 %v991, %v1025
        %v1056 = vadd.f32 %v992, %v1027
        %v1057 = vadd.f32 %v993, %v1029
        %v1058 = vadd.f32 %v994, %v1031
        %v1059 = vadd.f32 %v995, %v1033
        %v1060 = vadd.f32 %v996, %v1035
        %v1061 = vadd.f32 %v997, %v1037
        %v1062 = vadd.f32 %v998, %v1039
        %v1063 = vadd.f32 %v999, %v1041
        %v1064 = vadd.f32 %v1000, %v1043
        %v1065 = vadd.f32 %v1001, %v1045
        %v1066 = vadd.f32 %v1002, %v1047
        %v1067 = vadd.f32 %v1003, %v1049
        %v1068 = vadd.f32 %v1004, %v1051
        %v1069 = vadd.f32 %v1005, %v1053
        %vm1070 = vcmask 7168
        %1071 = vst.msk [vmem:[#allocation2] sm:$0xff] %vm1070, %v1054
        %1072 = vst.msk [vmem:[#allocation2 + $0x8] sm:$0xff] %vm1070, %v1055
        %1073 = vst.msk [vmem:[#allocation2 + $0x10] sm:$0xff] %vm1070, %v1056
        %1074 = vst.msk [vmem:[#allocation2 + $0x18] sm:$0xff] %vm1070, %v1057
        %1075 = vst.msk [vmem:[#allocation2 + $0x20] sm:$0xff] %vm1070, %v1058
        %1076 = vst.msk [vmem:[#allocation2 + $0x28] sm:$0xff] %vm1070, %v1059
        %1077 = vst.msk [vmem:[#allocation2 + $0x30] sm:$0xff] %vm1070, %v1060
        %1078 = vst.msk [vmem:[#allocation2 + $0x38] sm:$0xff] %vm1070, %v1061
        %1079 = vst.msk [vmem:[#allocation2 + $0x40] sm:$0xff] %vm1070, %v1062
        %1080 = vst.msk [vmem:[#allocation2 + $0x48] sm:$0xff] %vm1070, %v1063
        %1081 = vst.msk [vmem:[#allocation2 + $0x50] sm:$0xff] %vm1070, %v1064
        %1082 = vst.msk [vmem:[#allocation2 + $0x58] sm:$0xff] %vm1070, %v1065
        %1083 = vst.msk [vmem:[#allocation2 + $0x60] sm:$0xff] %vm1070, %v1066
        %1084 = vst.msk [vmem:[#allocation2 + $0x68] sm:$0xff] %vm1070, %v1067
        %1085 = vst.msk [vmem:[#allocation2 + $0x70] sm:$0xff] %vm1070, %v1068
        %1086 = vst.msk [vmem:[#allocation2 + $0x78] sm:$0xff] %vm1070, %v1069
        %v1087 = vld [vmem:[#allocation3] sm:$0xff]
        %v1088 = vld [vmem:[#allocation3 + $0x8] sm:$0xff]
        %v1089 = vld [vmem:[#allocation3 + $0x10] sm:$0xff]
        %v1090 = vld [vmem:[#allocation3 + $0x18] sm:$0xff]
        %v1091 = vld [vmem:[#allocation3 + $0x20] sm:$0xff]
        %v1092 = vld [vmem:[#allocation3 + $0x28] sm:$0xff]
        %v1093 = vld [vmem:[#allocation3 + $0x30] sm:$0xff]
        %v1094 = vld [vmem:[#allocation3 + $0x38] sm:$0xff]
        %v1095 = vld [vmem:[#allocation3 + $0x40] sm:$0xff]
        %v1096 = vld [vmem:[#allocation3 + $0x48] sm:$0xff]
        %v1097 = vld [vmem:[#allocation3 + $0x50] sm:$0xff]
        %v1098 = vld [vmem:[#allocation3 + $0x58] sm:$0xff]
        %v1099 = vld [vmem:[#allocation3 + $0x60] sm:$0xff]
        %v1100 = vld [vmem:[#allocation3 + $0x68] sm:$0xff]
        %v1101 = vld [vmem:[#allocation3 + $0x70] sm:$0xff]
        %v1102 = vld [vmem:[#allocation3 + $0x78] sm:$0xff]
        %v1103 = vlog2.pop %v817
        %v1104 = vmul.f32 %v1103, 0.6931472
        %v1105 = vlog2.pop %v818
        %v1106 = vmul.f32 %v1105, 0.6931472
        %v1107 = vlog2.pop %v819
        %v1108 = vmul.f32 %v1107, 0.6931472
        %v1109 = vlog2.pop %v820
        %v1110 = vmul.f32 %v1109, 0.6931472
        %v1111 = vlog2.pop %v821
        %v1112 = vmul.f32 %v1111, 0.6931472
        %v1113 = vlog2.pop %v822
        %v1114 = vmul.f32 %v1113, 0.6931472
        %v1115 = vlog2.pop %v823
        %v1116 = vmul.f32 %v1115, 0.6931472
        %v1117 = vlog2.pop %v824
        %v1118 = vmul.f32 %v1117, 0.6931472
        %v1119 = vlog2.pop %v825
        %v1120 = vmul.f32 %v1119, 0.6931472
        %v1121 = vlog2.pop %v826
        %v1122 = vmul.f32 %v1121, 0.6931472
        %v1123 = vlog2.pop %v827
        %v1124 = vmul.f32 %v1123, 0.6931472
        %v1125 = vlog2.pop %v828
        %v1126 = vmul.f32 %v1125, 0.6931472
        %v1127 = vlog2.pop %v829
        %v1128 = vmul.f32 %v1127, 0.6931472
        %v1129 = vlog2.pop %v830
        %v1130 = vmul.f32 %v1129, 0.6931472
        %v1131 = vlog2.pop %v831
        %v1132 = vmul.f32 %v1131, 0.6931472
        %v1133 = vlog2.pop %v832
        %v1134 = vmul.f32 %v1133, 0.6931472
        %v1135 = vsel %vm974, %v1104, 0.0
        %v1136 = vsel %vm975, %v1106, 0.0
        %v1137 = vsel %vm976, %v1108, 0.0
        %v1138 = vsel %vm977, %v1110, 0.0
        %v1139 = vsel %vm978, %v1112, 0.0
        %v1140 = vsel %vm979, %v1114, 0.0
        %v1141 = vsel %vm980, %v1116, 0.0
        %v1142 = vsel %vm981, %v1118, 0.0
        %v1143 = vsel %vm982, %v1120, 0.0
        %v1144 = vsel %vm983, %v1122, 0.0
        %v1145 = vsel %vm984, %v1124, 0.0
        %v1146 = vsel %vm985, %v1126, 0.0
        %v1147 = vsel %vm986, %v1128, 0.0
        %v1148 = vsel %vm987, %v1130, 0.0
        %v1149 = vsel %vm988, %v1132, 0.0
        %v1150 = vsel %vm989, %v1134, 0.0
        %1151 = vadd.xlane.f32.xlu0 %v1135
        %v1152 = vpop.xlane.xlu0 %1151
        %1153 = vadd.xlane.f32.xlu0 %v1136
        %v1154 = vpop.xlane.xlu0 %1153
        %1155 = vadd.xlane.f32.xlu0 %v1137
        %v1156 = vpop.xlane.xlu0 %1155
        %1157 = vadd.xlane.f32.xlu0 %v1138
        %v1158 = vpop.xlane.xlu0 %1157
        %1159 = vadd.xlane.f32.xlu0 %v1139
        %v1160 = vpop.xlane.xlu0 %1159
        %1161 = vadd.xlane.f32.xlu0 %v1140
        %v1162 = vpop.xlane.xlu0 %1161
        %1163 = vadd.xlane.f32.xlu0 %v1141
        %v1164 = vpop.xlane.xlu0 %1163
        %1165 = vadd.xlane.f32.xlu0 %v1142
        %v1166 = vpop.xlane.xlu0 %1165
        %1167 = vadd.xlane.f32.xlu0 %v1143
        %v1168 = vpop.xlane.xlu0 %1167
        %1169 = vadd.xlane.f32.xlu0 %v1144
        %v1170 = vpop.xlane.xlu0 %1169
        %1171 = vadd.xlane.f32.xlu0 %v1145
        %v1172 = vpop.xlane.xlu0 %1171
        %1173 = vadd.xlane.f32.xlu0 %v1146
        %v1174 = vpop.xlane.xlu0 %1173
        %1175 = vadd.xlane.f32.xlu0 %v1147
        %v1176 = vpop.xlane.xlu0 %1175
        %1177 = vadd.xlane.f32.xlu0 %v1148
        %v1178 = vpop.xlane.xlu0 %1177
        %1179 = vadd.xlane.f32.xlu0 %v1149
        %v1180 = vpop.xlane.xlu0 %1179
        %1181 = vadd.xlane.f32.xlu0 %v1150
        %v1182 = vpop.xlane.xlu0 %1181
        %v1183 = vadd.f32 %v1087, %v1152
        %v1184 = vadd.f32 %v1088, %v1154
        %v1185 = vadd.f32 %v1089, %v1156
        %v1186 = vadd.f32 %v1090, %v1158
        %v1187 = vadd.f32 %v1091, %v1160
        %v1188 = vadd.f32 %v1092, %v1162
        %v1189 = vadd.f32 %v1093, %v1164
        %v1190 = vadd.f32 %v1094, %v1166
        %v1191 = vadd.f32 %v1095, %v1168
        %v1192 = vadd.f32 %v1096, %v1170
        %v1193 = vadd.f32 %v1097, %v1172
        %v1194 = vadd.f32 %v1098, %v1174
        %v1195 = vadd.f32 %v1099, %v1176
        %v1196 = vadd.f32 %v1100, %v1178
        %v1197 = vadd.f32 %v1101, %v1180
        %v1198 = vadd.f32 %v1102, %v1182
        %1199 = vst.msk [vmem:[#allocation3] sm:$0xff] %vm1070, %v1183
        %1200 = vst.msk [vmem:[#allocation3 + $0x8] sm:$0xff] %vm1070, %v1184
        %1201 = vst.msk [vmem:[#allocation3 + $0x10] sm:$0xff] %vm1070, %v1185
        %1202 = vst.msk [vmem:[#allocation3 + $0x18] sm:$0xff] %vm1070, %v1186
        %1203 = vst.msk [vmem:[#allocation3 + $0x20] sm:$0xff] %vm1070, %v1187
        %1204 = vst.msk [vmem:[#allocation3 + $0x28] sm:$0xff] %vm1070, %v1188
        %1205 = vst.msk [vmem:[#allocation3 + $0x30] sm:$0xff] %vm1070, %v1189
        %1206 = vst.msk [vmem:[#allocation3 + $0x38] sm:$0xff] %vm1070, %v1190
        %1207 = vst.msk [vmem:[#allocation3 + $0x40] sm:$0xff] %vm1070, %v1191
        %1208 = vst.msk [vmem:[#allocation3 + $0x48] sm:$0xff] %vm1070, %v1192
        %1209 = vst.msk [vmem:[#allocation3 + $0x50] sm:$0xff] %vm1070, %v1193
        %1210 = vst.msk [vmem:[#allocation3 + $0x58] sm:$0xff] %vm1070, %v1194
        %1211 = vst.msk [vmem:[#allocation3 + $0x60] sm:$0xff] %vm1070, %v1195
        %1212 = vst.msk [vmem:[#allocation3 + $0x68] sm:$0xff] %vm1070, %v1196
        %1213 = vst.msk [vmem:[#allocation3 + $0x70] sm:$0xff] %vm1070, %v1197
        %1214 = vst.msk [vmem:[#allocation3 + $0x78] sm:$0xff] %vm1070, %v1198
        %v1215 = vld [vmem:[#allocation4] sm:$0xff]
        %v1216 = vld [vmem:[#allocation4 + $0x8] sm:$0xff]
        %v1217 = vld [vmem:[#allocation4 + $0x10] sm:$0xff]
        %v1218 = vld [vmem:[#allocation4 + $0x18] sm:$0xff]
        %v1219 = vld [vmem:[#allocation4 + $0x20] sm:$0xff]
        %v1220 = vld [vmem:[#allocation4 + $0x28] sm:$0xff]
        %v1221 = vld [vmem:[#allocation4 + $0x30] sm:$0xff]
        %v1222 = vld [vmem:[#allocation4 + $0x38] sm:$0xff]
        %v1223 = vld [vmem:[#allocation4 + $0x40] sm:$0xff]
        %v1224 = vld [vmem:[#allocation4 + $0x48] sm:$0xff]
        %v1225 = vld [vmem:[#allocation4 + $0x50] sm:$0xff]
        %v1226 = vld [vmem:[#allocation4 + $0x58] sm:$0xff]
        %v1227 = vld [vmem:[#allocation4 + $0x60] sm:$0xff]
        %v1228 = vld [vmem:[#allocation4 + $0x68] sm:$0xff]
        %v1229 = vld [vmem:[#allocation4 + $0x70] sm:$0xff]
        %v1230 = vld [vmem:[#allocation4 + $0x78] sm:$0xff]
        %v1231 = vsel %vm974, 1, 0
        %v1232 = vsel %vm975, 1, 0
        %v1233 = vsel %vm976, 1, 0
        %v1234 = vsel %vm977, 1, 0
        %v1235 = vsel %vm978, 1, 0
        %v1236 = vsel %vm979, 1, 0
        %v1237 = vsel %vm980, 1, 0
        %v1238 = vsel %vm981, 1, 0
        %v1239 = vsel %vm982, 1, 0
        %v1240 = vsel %vm983, 1, 0
        %v1241 = vsel %vm984, 1, 0
        %v1242 = vsel %vm985, 1, 0
        %v1243 = vsel %vm986, 1, 0
        %v1244 = vsel %vm987, 1, 0
        %v1245 = vsel %vm988, 1, 0
        %v1246 = vsel %vm989, 1, 0
        %v1247 = vcvt.s32.f32 %v1231
        %v1248 = vcvt.s32.f32 %v1232
        %v1249 = vcvt.s32.f32 %v1233
        %v1250 = vcvt.s32.f32 %v1234
        %v1251 = vcvt.s32.f32 %v1235
        %v1252 = vcvt.s32.f32 %v1236
        %v1253 = vcvt.s32.f32 %v1237
        %v1254 = vcvt.s32.f32 %v1238
        %v1255 = vcvt.s32.f32 %v1239
        %v1256 = vcvt.s32.f32 %v1240
        %v1257 = vcvt.s32.f32 %v1241
        %v1258 = vcvt.s32.f32 %v1242
        %v1259 = vcvt.s32.f32 %v1243
        %v1260 = vcvt.s32.f32 %v1244
        %v1261 = vcvt.s32.f32 %v1245
        %v1262 = vcvt.s32.f32 %v1246
        %1263 = vadd.xlane.f32.xlu0 %v1247
        %v1264 = vpop.xlane.xlu0 %1263
        %1265 = vadd.xlane.f32.xlu0 %v1248
        %v1266 = vpop.xlane.xlu0 %1265
        %1267 = vadd.xlane.f32.xlu0 %v1249
        %v1268 = vpop.xlane.xlu0 %1267
        %1269 = vadd.xlane.f32.xlu0 %v1250
        %v1270 = vpop.xlane.xlu0 %1269
        %1271 = vadd.xlane.f32.xlu0 %v1251
        %v1272 = vpop.xlane.xlu0 %1271
        %1273 = vadd.xlane.f32.xlu0 %v1252
        %v1274 = vpop.xlane.xlu0 %1273
        %1275 = vadd.xlane.f32.xlu0 %v1253
        %v1276 = vpop.xlane.xlu0 %1275
        %1277 = vadd.xlane.f32.xlu0 %v1254
        %v1278 = vpop.xlane.xlu0 %1277
        %1279 = vadd.xlane.f32.xlu0 %v1255
        %v1280 = vpop.xlane.xlu0 %1279
        %1281 = vadd.xlane.f32.xlu0 %v1256
        %v1282 = vpop.xlane.xlu0 %1281
        %1283 = vadd.xlane.f32.xlu0 %v1257
        %v1284 = vpop.xlane.xlu0 %1283
        %1285 = vadd.xlane.f32.xlu0 %v1258
        %v1286 = vpop.xlane.xlu0 %1285
        %1287 = vadd.xlane.f32.xlu0 %v1259
        %v1288 = vpop.xlane.xlu0 %1287
        %1289 = vadd.xlane.f32.xlu0 %v1260
        %v1290 = vpop.xlane.xlu0 %1289
        %1291 = vadd.xlane.f32.xlu0 %v1261
        %v1292 = vpop.xlane.xlu0 %1291
        %1293 = vadd.xlane.f32.xlu0 %v1262
        %v1294 = vpop.xlane.xlu0 %1293
        %v1295 = vadd.f32 %v1215, %v1264
        %v1296 = vadd.f32 %v1216, %v1266
        %v1297 = vadd.f32 %v1217, %v1268
        %v1298 = vadd.f32 %v1218, %v1270
        %v1299 = vadd.f32 %v1219, %v1272
        %v1300 = vadd.f32 %v1220, %v1274
        %v1301 = vadd.f32 %v1221, %v1276
        %v1302 = vadd.f32 %v1222, %v1278
        %v1303 = vadd.f32 %v1223, %v1280
        %v1304 = vadd.f32 %v1224, %v1282
        %v1305 = vadd.f32 %v1225, %v1284
        %v1306 = vadd.f32 %v1226, %v1286
        %v1307 = vadd.f32 %v1227, %v1288
        %v1308 = vadd.f32 %v1228, %v1290
        %v1309 = vadd.f32 %v1229, %v1292
        %v1310 = vadd.f32 %v1230, %v1294
        %1311 = vst.msk [vmem:[#allocation4] sm:$0xff] %vm1070, %v1295
        %1312 = vst.msk [vmem:[#allocation4 + $0x8] sm:$0xff] %vm1070, %v1296
        %1313 = vst.msk [vmem:[#allocation4 + $0x10] sm:$0xff] %vm1070, %v1297
        %1314 = vst.msk [vmem:[#allocation4 + $0x18] sm:$0xff] %vm1070, %v1298
        %1315 = vst.msk [vmem:[#allocation4 + $0x20] sm:$0xff] %vm1070, %v1299
        %1316 = vst.msk [vmem:[#allocation4 + $0x28] sm:$0xff] %vm1070, %v1300
        %1317 = vst.msk [vmem:[#allocation4 + $0x30] sm:$0xff] %vm1070, %v1301
        %1318 = vst.msk [vmem:[#allocation4 + $0x38] sm:$0xff] %vm1070, %v1302
        %1319 = vst.msk [vmem:[#allocation4 + $0x40] sm:$0xff] %vm1070, %v1303
        %1320 = vst.msk [vmem:[#allocation4 + $0x48] sm:$0xff] %vm1070, %v1304
        %1321 = vst.msk [vmem:[#allocation4 + $0x50] sm:$0xff] %vm1070, %v1305
        %1322 = vst.msk [vmem:[#allocation4 + $0x58] sm:$0xff] %vm1070, %v1306
        %1323 = vst.msk [vmem:[#allocation4 + $0x60] sm:$0xff] %vm1070, %v1307
        %1324 = vst.msk [vmem:[#allocation4 + $0x68] sm:$0xff] %vm1070, %v1308
        %1325 = vst.msk [vmem:[#allocation4 + $0x70] sm:$0xff] %vm1070, %v1309
        %1326 = vst.msk [vmem:[#allocation4 + $0x78] sm:$0xff] %vm1070, %v1310
        %p1327 = scmp.eq.s32.totalorder %s25, 1
        // Predicated region
        $region45: #{tpu_custom_call.1} parent=35 // pred_check
          %p1328 = pneg %p1327
        $region46: #{tpu_custom_call.1} parent=35 // pred_check_branch
          %1330 = sbr.rel (%p1328) target = $region48
        $region47: #{tpu_custom_call.1} parent=35 // pred_region
          %v1331 = vld [vmem:[#allocation4] sm:$0xff]
          %v1332 = vld [vmem:[#allocation4 + $0x8] sm:$0xff]
          %v1333 = vld [vmem:[#allocation4 + $0x10] sm:$0xff]
          %v1334 = vld [vmem:[#allocation4 + $0x18] sm:$0xff]
          %v1335 = vld [vmem:[#allocation4 + $0x20] sm:$0xff]
          %v1336 = vld [vmem:[#allocation4 + $0x28] sm:$0xff]
          %v1337 = vld [vmem:[#allocation4 + $0x30] sm:$0xff]
          %v1338 = vld [vmem:[#allocation4 + $0x38] sm:$0xff]
          %v1339 = vld [vmem:[#allocation4 + $0x40] sm:$0xff]
          %v1340 = vld [vmem:[#allocation4 + $0x48] sm:$0xff]
          %v1341 = vld [vmem:[#allocation4 + $0x50] sm:$0xff]
          %v1342 = vld [vmem:[#allocation4 + $0x58] sm:$0xff]
          %v1343 = vld [vmem:[#allocation4 + $0x60] sm:$0xff]
          %v1344 = vld [vmem:[#allocation4 + $0x68] sm:$0xff]
          %v1345 = vld [vmem:[#allocation4 + $0x70] sm:$0xff]
          %v1346 = vld [vmem:[#allocation4 + $0x78] sm:$0xff]
          %v1347 = vld [vmem:[#allocation2] sm:$0xff]
          %v1348 = vld [vmem:[#allocation2 + $0x8] sm:$0xff]
          %v1349 = vld [vmem:[#allocation2 + $0x10] sm:$0xff]
          %v1350 = vld [vmem:[#allocation2 + $0x18] sm:$0xff]
          %v1351 = vld [vmem:[#allocation2 + $0x20] sm:$0xff]
          %v1352 = vld [vmem:[#allocation2 + $0x28] sm:$0xff]
          %v1353 = vld [vmem:[#allocation2 + $0x30] sm:$0xff]
          %v1354 = vld [vmem:[#allocation2 + $0x38] sm:$0xff]
          %v1355 = vld [vmem:[#allocation2 + $0x40] sm:$0xff]
          %v1356 = vld [vmem:[#allocation2 + $0x48] sm:$0xff]
          %v1357 = vld [vmem:[#allocation2 + $0x50] sm:$0xff]
          %v1358 = vld [vmem:[#allocation2 + $0x58] sm:$0xff]
          %v1359 = vld [vmem:[#allocation2 + $0x60] sm:$0xff]
          %v1360 = vld [vmem:[#allocation2 + $0x68] sm:$0xff]
          %v1361 = vld [vmem:[#allocation2 + $0x70] sm:$0xff]
          %v1362 = vld [vmem:[#allocation2 + $0x78] sm:$0xff]
          %v1363 = vlog2.pop %v1347
          %v1364 = vmul.f32 %v1363, 0.6931472
          %v1365 = vlog2.pop %v1348
          %v1366 = vmul.f32 %v1365, 0.6931472
          %v1367 = vlog2.pop %v1349
          %v1368 = vmul.f32 %v1367, 0.6931472
          %v1369 = vlog2.pop %v1350
          %v1370 = vmul.f32 %v1369, 0.6931472
          %v1371 = vlog2.pop %v1351
          %v1372 = vmul.f32 %v1371, 0.6931472
          %v1373 = vlog2.pop %v1352
          %v1374 = vmul.f32 %v1373, 0.6931472
          %v1375 = vlog2.pop %v1353
          %v1376 = vmul.f32 %v1375, 0.6931472
          %v1377 = vlog2.pop %v1354
          %v1378 = vmul.f32 %v1377, 0.6931472
          %v1379 = vlog2.pop %v1355
          %v1380 = vmul.f32 %v1379, 0.6931472
          %v1381 = vlog2.pop %v1356
          %v1382 = vmul.f32 %v1381, 0.6931472
          %v1383 = vlog2.pop %v1357
          %v1384 = vmul.f32 %v1383, 0.6931472
          %v1385 = vlog2.pop %v1358
          %v1386 = vmul.f32 %v1385, 0.6931472
          %v1387 = vlog2.pop %v1359
          %v1388 = vmul.f32 %v1387, 0.6931472
          %v1389 = vlog2.pop %v1360
          %v1390 = vmul.f32 %v1389, 0.6931472
          %v1391 = vlog2.pop %v1361
          %v1392 = vmul.f32 %v1391, 0.6931472
          %v1393 = vlog2.pop %v1362
          %v1394 = vmul.f32 %v1393, 0.6931472
          %v1395 = vmul.f32 %v1331, %v1364
          %v1396 = vmul.f32 %v1332, %v1366
          %v1397 = vmul.f32 %v1333, %v1368
          %v1398 = vmul.f32 %v1334, %v1370
          %v1399 = vmul.f32 %v1335, %v1372
          %v1400 = vmul.f32 %v1336, %v1374
          %v1401 = vmul.f32 %v1337, %v1376
          %v1402 = vmul.f32 %v1338, %v1378
          %v1403 = vmul.f32 %v1339, %v1380
          %v1404 = vmul.f32 %v1340, %v1382
          %v1405 = vmul.f32 %v1341, %v1384
          %v1406 = vmul.f32 %v1342, %v1386
          %v1407 = vmul.f32 %v1343, %v1388
          %v1408 = vmul.f32 %v1344, %v1390
          %v1409 = vmul.f32 %v1345, %v1392
          %v1410 = vmul.f32 %v1346, %v1394
          %v1411 = vld [vmem:[#allocation3] sm:$0xff]
          %v1412 = vld [vmem:[#allocation3 + $0x8] sm:$0xff]
          %v1413 = vld [vmem:[#allocation3 + $0x10] sm:$0xff]
          %v1414 = vld [vmem:[#allocation3 + $0x18] sm:$0xff]
          %v1415 = vld [vmem:[#allocation3 + $0x20] sm:$0xff]
          %v1416 = vld [vmem:[#allocation3 + $0x28] sm:$0xff]
          %v1417 = vld [vmem:[#allocation3 + $0x30] sm:$0xff]
          %v1418 = vld [vmem:[#allocation3 + $0x38] sm:$0xff]
          %v1419 = vld [vmem:[#allocation3 + $0x40] sm:$0xff]
          %v1420 = vld [vmem:[#allocation3 + $0x48] sm:$0xff]
          %v1421 = vld [vmem:[#allocation3 + $0x50] sm:$0xff]
          %v1422 = vld [vmem:[#allocation3 + $0x58] sm:$0xff]
          %v1423 = vld [vmem:[#allocation3 + $0x60] sm:$0xff]
          %v1424 = vld [vmem:[#allocation3 + $0x68] sm:$0xff]
          %v1425 = vld [vmem:[#allocation3 + $0x70] sm:$0xff]
          %v1426 = vld [vmem:[#allocation3 + $0x78] sm:$0xff]
          %v1427 = vsub.f32 %v1395, %v1411
          %v1428 = vsub.f32 %v1396, %v1412
          %v1429 = vsub.f32 %v1397, %v1413
          %v1430 = vsub.f32 %v1398, %v1414
          %v1431 = vsub.f32 %v1399, %v1415
          %v1432 = vsub.f32 %v1400, %v1416
          %v1433 = vsub.f32 %v1401, %v1417
          %v1434 = vsub.f32 %v1402, %v1418
          %v1435 = vsub.f32 %v1403, %v1419
          %v1436 = vsub.f32 %v1404, %v1420
          %v1437 = vsub.f32 %v1405, %v1421
          %v1438 = vsub.f32 %v1406, %v1422
          %v1439 = vsub.f32 %v1407, %v1423
          %v1440 = vsub.f32 %v1408, %v1424
          %v1441 = vsub.f32 %v1409, %v1425
          %v1442 = vsub.f32 %v1410, %v1426
          %1443 = vst.msk [vmem:[%s323] sm:$0xff] %vm1070, %v1427
          %1444 = vst.msk [vmem:[%s323 + $0x8] sm:$0xff] %vm1070, %v1428
          %1445 = vst.msk [vmem:[%s323 + $0x10] sm:$0xff] %vm1070, %v1429
          %1446 = vst.msk [vmem:[%s323 + $0x18] sm:$0xff] %vm1070, %v1430
          %1447 = vst.msk [vmem:[%s323 + $0x20] sm:$0xff] %vm1070, %v1431
          %1448 = vst.msk [vmem:[%s323 + $0x28] sm:$0xff] %vm1070, %v1432
          %1449 = vst.msk [vmem:[%s323 + $0x30] sm:$0xff] %vm1070, %v1433
          %1450 = vst.msk [vmem:[%s323 + $0x38] sm:$0xff] %vm1070, %v1434
          %1451 = vst.msk [vmem:[%s323 + $0x40] sm:$0xff] %vm1070, %v1435
          %1452 = vst.msk [vmem:[%s323 + $0x48] sm:$0xff] %vm1070, %v1436
          %1453 = vst.msk [vmem:[%s323 + $0x50] sm:$0xff] %vm1070, %v1437
          %1454 = vst.msk [vmem:[%s323 + $0x58] sm:$0xff] %vm1070, %v1438
          %1455 = vst.msk [vmem:[%s323 + $0x60] sm:$0xff] %vm1070, %v1439
          %1456 = vst.msk [vmem:[%s323 + $0x68] sm:$0xff] %vm1070, %v1440
          %1457 = vst.msk [vmem:[%s323 + $0x70] sm:$0xff] %vm1070, %v1441
          %1458 = vst.msk [vmem:[%s323 + $0x78] sm:$0xff] %vm1070, %v1442
          %1459 = vst.msk [vmem:[%s329] sm:$0xff] %vm1070, %v1331
          %1460 = vst.msk [vmem:[%s329 + $0x8] sm:$0xff] %vm1070, %v1332
          %1461 = vst.msk [vmem:[%s329 + $0x10] sm:$0xff] %vm1070, %v1333
          %1462 = vst.msk [vmem:[%s329 + $0x18] sm:$0xff] %vm1070, %v1334
          %1463 = vst.msk [vmem:[%s329 + $0x20] sm:$0xff] %vm1070, %v1335
          %1464 = vst.msk [vmem:[%s329 + $0x28] sm:$0xff] %vm1070, %v1336
          %1465 = vst.msk [vmem:[%s329 + $0x30] sm:$0xff] %vm1070, %v1337
          %1466 = vst.msk [vmem:[%s329 + $0x38] sm:$0xff] %vm1070, %v1338
          %1467 = vst.msk [vmem:[%s329 + $0x40] sm:$0xff] %vm1070, %v1339
          %1468 = vst.msk [vmem:[%s329 + $0x48] sm:$0xff] %vm1070, %v1340
          %1469 = vst.msk [vmem:[%s329 + $0x50] sm:$0xff] %vm1070, %v1341
          %1470 = vst.msk [vmem:[%s329 + $0x58] sm:$0xff] %vm1070, %v1342
          %1471 = vst.msk [vmem:[%s329 + $0x60] sm:$0xff] %vm1070, %v1343
          %1472 = vst.msk [vmem:[%s329 + $0x68] sm:$0xff] %vm1070, %v1344
          %1473 = vst.msk [vmem:[%s329 + $0x70] sm:$0xff] %vm1070, %v1345
          %1474 = vst.msk [vmem:[%s329 + $0x78] sm:$0xff] %vm1070, %v1346
        $region48: #{tpu_custom_call.1} parent=35 // pred_fallthru
          _
        %s1475 = smul.u32 16, %s24
        %p1476 = scmp.lt.s32.totalorder %s1475, 31
        %s1477 = scalar_select %p1476, %s1475, 31
        %s1478 = smul.addr %s1477, 8
        %s1479 = scalar_lea.vmem %s4, %s1478
        %s1480 = smul.u32 16, %s24
        %p1481 = scmp.lt.s32.totalorder %s1480, 31
        %s1482 = scalar_select %p1481, %s1480, 31
        %s1483 = smul.addr %s1482, 8
        %s1484 = scalar_lea.vmem %s5, %s1483
        // Predicated region
        $region49: #{tpu_custom_call.1} parent=35 // pred_check
          %p1485 = pneg %p154
        $region50: #{tpu_custom_call.1} parent=35 // pred_check_branch
          %1487 = sbr.rel (%p1485) target = $region52
        $region51: #{tpu_custom_call.1} parent=35 // pred_region
          %s1488 = smul.u32 16, %s24
        $region52: #{tpu_custom_call.1} parent=35 // pred_fallthru
          _
        // Predicated region
        $region53: #{tpu_custom_call.1} parent=35 // pred_check
          %p1489 = pneg %p180
        $region54: #{tpu_custom_call.1} parent=35 // pred_check_branch
          %1491 = sbr.rel (%p1489) target = $region56
        $region55: #{tpu_custom_call.1} parent=35 // pred_region
          %s1492 = smul.u32 16, %s24
        $region56: #{tpu_custom_call.1} parent=35 // pred_fallthru
          _
      $region36: #{tpu_custom_call.1} parent=5 // pred_fallthru
        _
      %p1493 = scmp.le.s32.totalorder 2, %s15
      // Predicated region
      $region57: #{tpu_custom_call.1} parent=5 // pred_check
        %p1494 = pneg %p1493
      $region58: #{tpu_custom_call.1} parent=5 // pred_check_branch
        %1496 = sbr.rel (%p1494) target = $region60
      $region59: #{tpu_custom_call.1} parent=5 // pred_region
        %s1497 = ssub.s32 %s15, 2
        // Predicated region
        $region61: #{tpu_custom_call.1} parent=59 // pred_check
          %p1498 = pneg %p160
        $region62: #{tpu_custom_call.1} parent=59 // pred_check_branch
          %1500 = sbr.rel (%p1498) target = $region64
        $region63: #{tpu_custom_call.1} parent=59 // pred_region
          %s1501 = smul.u32 16, %s26
          %p1502 = scmp.lt.s32.totalorder %s1501, 31
          %s1503 = scalar_select %p1502, %s1501, 31
          %s1504 = smul.addr %s1503, 8
          %s1505 = scalar_lea.vmem %s4, %s1504
        $region64: #{tpu_custom_call.1} parent=59 // pred_fallthru
          _
        // Predicated region
        $region65: #{tpu_custom_call.1} parent=59 // pred_check
          %p1506 = pneg %p186
        $region66: #{tpu_custom_call.1} parent=59 // pred_check_branch
          %1508 = sbr.rel (%p1506) target = $region68
        $region67: #{tpu_custom_call.1} parent=59 // pred_region
          %s1509 = smul.u32 16, %s26
          %p1510 = scmp.lt.s32.totalorder %s1509, 31
          %s1511 = scalar_select %p1510, %s1509, 31
          %s1512 = smul.addr %s1511, 8
          %s1513 = scalar_lea.vmem %s5, %s1512
        $region68: #{tpu_custom_call.1} parent=59 // pred_fallthru
          _
      $region60: #{tpu_custom_call.1} parent=5 // pred_fallthru
        _
    $region6: #{tpu_custom_call.1} parent=1 // loop_footer
      %s19 = sadd.s32 1, %s15
    $region7: #{tpu_custom_call.1} parent=1 // loop_footer_branch
      %14 = sbr.rel target = $region3
    $region8: #{tpu_custom_call.1} parent=1 // loop_exit
      _
    %1514 = vsyncpa [#allocation6], 1
    %s1515 = scalar_lea.sflag [#allocation6], 1
    %1516 = vsyncpa %s1515, 1

</llo_original>
